<compile_context>
chip_gen: v6e
topology: v6e:2x2x1
jax: 0.10.0
libtpu: 0.0.40
codegen_flags: <defaults>
</compile_context>

<pallas_src>
import numpy as np
import jax
import jax.numpy as jnp
from jax.experimental import pallas as pl
from jax.experimental.pallas import tpu as pltpu

INPUT_DIM = 784                    # 28 * 28 flattened MNIST
HIDDEN_DIMS = (256, 128, 64)
H3_PAD = 128                       # last hidden layer padded 64 -> 128 lanes
OUTPUT_DIM = 10
OUT_PAD = 128                      # lane-dense padded logits width
DROPOUT_P = 0.5
KEEP_SCALE = 1.0 / (1.0 - DROPOUT_P)
# keep iff int32(bits) >= THR; for p = 0.5 this is a plain sign-bit test.
_DROP_THR_I32 = min(int(round(DROPOUT_P * (1 << 32))) - (1 << 31), (1 << 31) - 1)


def _round_up(n, m):
    return ((n + m - 1) // m) * m


def _choose_tiles(batch, max_tile_rows=1024):
    """Even grid of >= 2 steps (v7x megacore), tile rows a multiple of 8."""
    nb = max(2, -(-batch // max_tile_rows))
    if nb % 2:
        nb += 1
    tb = _round_up(-(-batch // nb), 8)
    return tb, nb


def _make_kernel(use_hw_prng):
    def kernel(seed_ref,                                   # scalar prefetch (SMEM)
               x_ref,                                      # (TB, 784) bf16
               w1_ref, b1_ref, w2_ref, b2_ref,
               w3_ref, b3_ref, w4_ref, b4_ref,
               out_ref):                                   # (TB, OUT_PAD) f32
        tb = x_ref.shape[0]

        if use_hw_prng:
            # Hardware PRNG path (real TPU only): distinct stream per tile.
            pltpu.prng_seed(seed_ref[0], pl.program_id(0))
            row_term = None
            seed_u32 = None
        else:
            # Counter-hash path (also lowers under interpret mode).
            seed_u32 = seed_ref[0].astype(jnp.uint32)
            row_off = pl.program_id(0) * tb                # global row offset
            rows = jax.lax.broadcasted_iota(jnp.int32, (tb, 1), 0) + row_off
            # Hoisted once per tile, reused by every layer.
            row_term = rows.astype(jnp.uint32) * np.uint32(0x9E3779B9)

        def relu_dropout(z, layer_idx):
            """Fused ReLU + inverted MC dropout (scale folded into next W)."""
            if use_hw_prng:
                bits = pltpu.prng_random_bits(z.shape)
            else:
                n = z.shape[1]
                cols = jax.lax.broadcasted_iota(jnp.int32, (1, n), 1)
                col_term = (cols.astype(jnp.uint32) * np.uint32(0x85EBCA6B)
                            + seed_u32 * np.uint32(0xC2B2AE35)
                            + np.uint32((layer_idx + 1) * 0x27D4EB2F))
                bits = row_term + col_term                 # one full-size add
                bits = (bits ^ (bits >> 16)) * np.uint32(0x7FEB352D)
                bits = (bits ^ (bits >> 15)) * np.uint32(0x846CA68B)
            if bits.dtype != jnp.int32:
                bits = jax.lax.bitcast_convert_type(bits, jnp.int32)
            keep = bits >= _DROP_THR_I32                   # sign test for p=0.5
            return jnp.where((z > 0.0) & keep, z, 0.0).astype(jnp.bfloat16)

        h = x_ref[...]                                     # bf16 activations
        hidden = ((w1_ref, b1_ref), (w2_ref, b2_ref), (w3_ref, b3_ref))
        for layer_idx, (w_ref, b_ref) in enumerate(hidden):
            z = jnp.dot(h, w_ref[...],
                        preferred_element_type=jnp.float32) + b_ref[...]
            h = relu_dropout(z, layer_idx)

        # output_layer: raw logits (padded to 128 lanes), no activation/dropout.
        out_ref[...] = (jnp.dot(h, w4_ref[...],
                                preferred_element_type=jnp.float32)
                        + b4_ref[...])

    return kernel


def mc_dropout_nn_forward(x, params, seed=0, max_tile_rows=1024,
                          use_hw_prng=False):
    """params = [w1, b1, w2, b2, w3, b3, w4, b4]; wi: (din, dout), bi: (1, dout)."""
    w1, b1, w2, b2, w3, b3, w4, b4 = params
    batch = x.shape[0]

    tb, nb = _choose_tiles(batch, max_tile_rows)
    b_pad = tb * nb

    # bf16 activations/weights (MXU native), f32 biases & accumulation.
    x_bf = x.astype(jnp.bfloat16)
    if b_pad != batch:
        x_bf = jnp.pad(x_bf, ((0, b_pad - batch), (0, 0)))

    h3_extra = H3_PAD - HIDDEN_DIMS[2]
    w1b = w1.astype(jnp.bfloat16)
    # Fold the 1/(1-p) dropout scale of each hidden layer into the *next* W
    # (including the last dropout into w4).  Scale=2.0 is exact in bf16.
    w2b = (w2 * KEEP_SCALE).astype(jnp.bfloat16)
    w3b = jnp.pad(w3 * KEEP_SCALE, ((0, 0), (0, h3_extra))).astype(jnp.bfloat16)
    b3p = jnp.pad(b3, ((0, 0), (0, h3_extra)))
    w4b = jnp.pad(w4 * KEEP_SCALE,
                  ((0, h3_extra), (0, OUT_PAD - OUTPUT_DIM))).astype(jnp.bfloat16)
    b4p = jnp.pad(b4, ((0, 0), (0, OUT_PAD - OUTPUT_DIM)))

    seed_arr = jnp.asarray([seed], dtype=jnp.int32)

    def resident(arr):
        # Full-array block, constant index_map -> stays pinned in VMEM.
        return pl.BlockSpec(arr.shape, lambda i, s: (0, 0))

    grid_spec = pltpu.PrefetchScalarGridSpec(
        num_scalar_prefetch=1,
        grid=(nb,),
        in_specs=[
            pl.BlockSpec((tb, INPUT_DIM), lambda i, s: (i, 0)),   # x tile
            resident(w1b), resident(b1),
            resident(w2b), resident(b2),
            resident(w3b), resident(b3p),
            resident(w4b), resident(b4p),
        ],
        out_specs=pl.BlockSpec((tb, OUT_PAD), lambda i, s: (i, 0)),
    )

    out_padded = pl.pallas_call(
        _make_kernel(use_hw_prng),
        out_shape=jax.ShapeDtypeStruct((b_pad, OUT_PAD), jnp.float32),
        grid_spec=grid_spec,
        compiler_params=pltpu.CompilerParams(
            dimension_semantics=("parallel",)),
    )(seed_arr, x_bf, w1b, b1, w2b, b2, w3b, b3p, w4b, b4p)

    return out_padded[:batch, :OUTPUT_DIM]


def init_params(key):
    """Deterministic init mimicking PyTorch nn.Linear default U(-1/sqrt(fan_in), +)."""
    dims = (INPUT_DIM,) + HIDDEN_DIMS + (OUTPUT_DIM,)
    params = []
    for din, dout in zip(dims[:-1], dims[1:]):
        key, kw, kb = jax.random.split(key, 3)
        bound = 1.0 / float(din) ** 0.5
        w = jax.random.uniform(kw, (din, dout), jnp.float32, -bound, bound)
        b = jax.random.uniform(kb, (1, dout), jnp.float32, -bound, bound)
        params += [w, b]
    return params


if __name__ == "__main__":
    key = jax.random.PRNGKey(0)
    kx, kp = jax.random.split(key)

    # Small but grid-exercising batch: 256 rows -> 2 parallel tiles of 128.
    B = 256
    x = jax.random.normal(kx, (B, INPUT_DIM), dtype=jnp.float32)
    params = init_params(kp)

    out = mc_dropout_nn_forward(x, params, seed=0)
    out = jax.block_until_ready(out)

    assert out.shape == (B, OUTPUT_DIM), out.shape
    assert out.dtype == jnp.float32
    assert bool(jnp.all(jnp.isfinite(out)))

    # MC-dropout property: a different seed gives different stochastic logits.
    out2 = jax.block_until_ready(mc_dropout_nn_forward(x, params, seed=1))
    assert not bool(jnp.allclose(out, out2))

    print("KERNEL_OK")
</pallas_src>

<mosaic_0001>
module attributes {stable_mosaic.version = 11 : i64} {
  func.func @kernel(%arg0: i32, %arg1: memref<1xi32, #tpu.memory_space<smem>>, %arg2: memref<128x784xbf16, #tpu.memory_space<vmem>>, %arg3: memref<784x256xbf16, #tpu.memory_space<vmem>>, %arg4: memref<1x256xf32, #tpu.memory_space<vmem>>, %arg5: memref<256x128xbf16, #tpu.memory_space<vmem>>, %arg6: memref<1x128xf32, #tpu.memory_space<vmem>>, %arg7: memref<128x128xbf16, #tpu.memory_space<vmem>>, %arg8: memref<1x128xf32, #tpu.memory_space<vmem>>, %arg9: memref<128x128xbf16, #tpu.memory_space<vmem>>, %arg10: memref<1x128xf32, #tpu.memory_space<vmem>>, %arg11: memref<128x128xf32, #tpu.memory_space<vmem>>) attributes {dimension_semantics = [#tpu.dimension_semantics<parallel>], iteration_bounds = array<i64: 2>, scalar_prefetch = 1 : i64, scratch_operands = 0 : i64, tpu.core_type = #tpu.core_type<tc>, window_params = [{transform_indices = @transform_0, window_bounds = array<i64: 128, 784>}, {pipeline_mode = #tpu.pipeline_mode<synchronous>, transform_indices = @transform_1, window_bounds = array<i64: 784, 256>}, {pipeline_mode = #tpu.pipeline_mode<synchronous>, transform_indices = @transform_2, window_bounds = array<i64: 1, 256>}, {pipeline_mode = #tpu.pipeline_mode<synchronous>, transform_indices = @transform_3, window_bounds = array<i64: 256, 128>}, {pipeline_mode = #tpu.pipeline_mode<synchronous>, transform_indices = @transform_4, window_bounds = array<i64: 1, 128>}, {pipeline_mode = #tpu.pipeline_mode<synchronous>, transform_indices = @transform_5, window_bounds = array<i64: 128, 128>}, {pipeline_mode = #tpu.pipeline_mode<synchronous>, transform_indices = @transform_6, window_bounds = array<i64: 1, 128>}, {pipeline_mode = #tpu.pipeline_mode<synchronous>, transform_indices = @transform_7, window_bounds = array<i64: 128, 128>}, {pipeline_mode = #tpu.pipeline_mode<synchronous>, transform_indices = @transform_8, window_bounds = array<i64: 1, 128>}, {transform_indices = @transform_9, window_bounds = array<i64: 128, 128>}]} {
    %c0 = arith.constant 0 : index
    %0 = memref.load %arg1[%c0] : memref<1xi32, #tpu.memory_space<smem>>
    %c128_i32 = arith.constant 128 : i32
    %1 = arith.muli %arg0, %c128_i32 : i32
    %2 = tpu.iota {dimensions = array<i32: 0>} : vector<128x1xi32>
    %3 = vector.broadcast %1 : i32 to vector<128x1xi32>
    %4 = arith.addi %2, %3 : vector<128x1xi32>
    %c-1640531527_i32 = arith.constant -1640531527 : i32
    %5 = vector.broadcast %c-1640531527_i32 : i32 to vector<128x1xi32>
    %6 = arith.muli %4, %5 : vector<128x1xi32>
    %c0_0 = arith.constant 0 : index
    %c0_1 = arith.constant 0 : index
    %7 = vector.load %arg2[%c0_0, %c0_1] : memref<128x784xbf16, #tpu.memory_space<vmem>>, vector<128x784xbf16>
    %c0_2 = arith.constant 0 : index
    %c0_3 = arith.constant 0 : index
    %8 = vector.load %arg3[%c0_2, %c0_3] : memref<784x256xbf16, #tpu.memory_space<vmem>>, vector<784x256xbf16>
    %cst = arith.constant dense<0.000000e+00> : vector<128x256xf32>
    %9 = tpu.matmul %7, %8, %cst {dimension_numbers = #tpu.dot_dimension_numbers<[1], [0], [0], [1], [0, 0, 1, 1], [], []>} : vector<128x784xbf16>, vector<784x256xbf16>, vector<128x256xf32> -> vector<128x256xf32>
    %c0_4 = arith.constant 0 : index
    %c0_5 = arith.constant 0 : index
    %10 = vector.load %arg4[%c0_4, %c0_5] : memref<1x256xf32, #tpu.memory_space<vmem>>, vector<1x256xf32>
    %11 = vector.broadcast %10 : vector<1x256xf32> to vector<128x256xf32>
    %12 = arith.addf %9, %11 : vector<128x256xf32>
    %13 = tpu.iota {dimensions = array<i32: 1>} : vector<1x256xi32>
    %c-2048144789_i32 = arith.constant -2048144789 : i32
    %14 = vector.broadcast %c-2048144789_i32 : i32 to vector<1x256xi32>
    %15 = arith.muli %13, %14 : vector<1x256xi32>
    %c-1028477387_i32 = arith.constant -1028477387 : i32
    %16 = arith.muli %0, %c-1028477387_i32 : i32
    %17 = vector.broadcast %16 : i32 to vector<1x256xi32>
    %18 = arith.addi %15, %17 : vector<1x256xi32>
    %c668265263_i32 = arith.constant 668265263 : i32
    %19 = vector.broadcast %c668265263_i32 : i32 to vector<1x256xi32>
    %20 = arith.addi %18, %19 : vector<1x256xi32>
    %21 = vector.broadcast %6 : vector<128x1xi32> to vector<128x256xi32>
    %22 = vector.broadcast %20 : vector<1x256xi32> to vector<128x256xi32>
    %23 = arith.addi %21, %22 : vector<128x256xi32>
    %c16_i32 = arith.constant 16 : i32
    %24 = vector.broadcast %c16_i32 : i32 to vector<128x256xi32>
    %25 = arith.shrui %23, %24 : vector<128x256xi32>
    %26 = arith.xori %23, %25 : vector<128x256xi32>
    %c2146121005_i32 = arith.constant 2146121005 : i32
    %27 = vector.broadcast %c2146121005_i32 : i32 to vector<128x256xi32>
    %28 = arith.muli %26, %27 : vector<128x256xi32>
    %c15_i32 = arith.constant 15 : i32
    %29 = vector.broadcast %c15_i32 : i32 to vector<128x256xi32>
    %30 = arith.shrui %28, %29 : vector<128x256xi32>
    %31 = arith.xori %28, %30 : vector<128x256xi32>
    %c-2073254261_i32 = arith.constant -2073254261 : i32
    %32 = vector.broadcast %c-2073254261_i32 : i32 to vector<128x256xi32>
    %33 = arith.muli %31, %32 : vector<128x256xi32>
    %34 = tpu.bitcast %33 : vector<128x256xi32> -> vector<128x256xi32>
    %c0_i32 = arith.constant 0 : i32
    %35 = vector.broadcast %c0_i32 : i32 to vector<128x256xi32>
    %36 = arith.cmpi sge, %34, %35 : vector<128x256xi32>
    %cst_6 = arith.constant 0.000000e+00 : f32
    %37 = vector.broadcast %cst_6 : f32 to vector<128x256xf32>
    %38 = arith.cmpf ogt, %12, %37 : vector<128x256xf32>
    %39 = arith.andi %38, %36 : vector<128x256xi1>
    %cst_7 = arith.constant 0.000000e+00 : f32
    %40 = vector.broadcast %cst_7 : f32 to vector<128x256xf32>
    %41 = arith.select %39, %12, %40 : vector<128x256xi1>, vector<128x256xf32>
    %42 = arith.truncf %41 : vector<128x256xf32> to vector<128x256xbf16>
    %c0_8 = arith.constant 0 : index
    %c0_9 = arith.constant 0 : index
    %43 = vector.load %arg5[%c0_8, %c0_9] : memref<256x128xbf16, #tpu.memory_space<vmem>>, vector<256x128xbf16>
    %cst_10 = arith.constant dense<0.000000e+00> : vector<128x128xf32>
    %44 = tpu.matmul %42, %43, %cst_10 {dimension_numbers = #tpu.dot_dimension_numbers<[1], [0], [0], [1], [0, 0, 1, 1], [], []>} : vector<128x256xbf16>, vector<256x128xbf16>, vector<128x128xf32> -> vector<128x128xf32>
    %c0_11 = arith.constant 0 : index
    %c0_12 = arith.constant 0 : index
    %45 = vector.load %arg6[%c0_11, %c0_12] : memref<1x128xf32, #tpu.memory_space<vmem>>, vector<1x128xf32>
    %46 = vector.broadcast %45 : vector<1x128xf32> to vector<128x128xf32>
    %47 = arith.addf %44, %46 : vector<128x128xf32>
    %48 = tpu.iota {dimensions = array<i32: 1>} : vector<1x128xi32>
    %c-2048144789_i32_13 = arith.constant -2048144789 : i32
    %49 = vector.broadcast %c-2048144789_i32_13 : i32 to vector<1x128xi32>
    %50 = arith.muli %48, %49 : vector<1x128xi32>
    %c-1028477387_i32_14 = arith.constant -1028477387 : i32
    %51 = arith.muli %0, %c-1028477387_i32_14 : i32
    %52 = vector.broadcast %51 : i32 to vector<1x128xi32>
    %53 = arith.addi %50, %52 : vector<1x128xi32>
    %c1336530526_i32 = arith.constant 1336530526 : i32
    %54 = vector.broadcast %c1336530526_i32 : i32 to vector<1x128xi32>
    %55 = arith.addi %53, %54 : vector<1x128xi32>
    %56 = vector.broadcast %6 : vector<128x1xi32> to vector<128x128xi32>
    %57 = vector.broadcast %55 : vector<1x128xi32> to vector<128x128xi32>
    %58 = arith.addi %56, %57 : vector<128x128xi32>
    %c16_i32_15 = arith.constant 16 : i32
    %59 = vector.broadcast %c16_i32_15 : i32 to vector<128x128xi32>
    %60 = arith.shrui %58, %59 : vector<128x128xi32>
    %61 = arith.xori %58, %60 : vector<128x128xi32>
    %c2146121005_i32_16 = arith.constant 2146121005 : i32
    %62 = vector.broadcast %c2146121005_i32_16 : i32 to vector<128x128xi32>
    %63 = arith.muli %61, %62 : vector<128x128xi32>
    %c15_i32_17 = arith.constant 15 : i32
    %64 = vector.broadcast %c15_i32_17 : i32 to vector<128x128xi32>
    %65 = arith.shrui %63, %64 : vector<128x128xi32>
    %66 = arith.xori %63, %65 : vector<128x128xi32>
    %c-2073254261_i32_18 = arith.constant -2073254261 : i32
    %67 = vector.broadcast %c-2073254261_i32_18 : i32 to vector<128x128xi32>
    %68 = arith.muli %66, %67 : vector<128x128xi32>
    %69 = tpu.bitcast %68 : vector<128x128xi32> -> vector<128x128xi32>
    %c0_i32_19 = arith.constant 0 : i32
    %70 = vector.broadcast %c0_i32_19 : i32 to vector<128x128xi32>
    %71 = arith.cmpi sge, %69, %70 : vector<128x128xi32>
    %cst_20 = arith.constant 0.000000e+00 : f32
    %72 = vector.broadcast %cst_20 : f32 to vector<128x128xf32>
    %73 = arith.cmpf ogt, %47, %72 : vector<128x128xf32>
    %74 = arith.andi %73, %71 : vector<128x128xi1>
    %cst_21 = arith.constant 0.000000e+00 : f32
    %75 = vector.broadcast %cst_21 : f32 to vector<128x128xf32>
    %76 = arith.select %74, %47, %75 : vector<128x128xi1>, vector<128x128xf32>
    %77 = arith.truncf %76 : vector<128x128xf32> to vector<128x128xbf16>
    %c0_22 = arith.constant 0 : index
    %c0_23 = arith.constant 0 : index
    %78 = vector.load %arg7[%c0_22, %c0_23] : memref<128x128xbf16, #tpu.memory_space<vmem>>, vector<128x128xbf16>
    %cst_24 = arith.constant dense<0.000000e+00> : vector<128x128xf32>
    %79 = tpu.matmul %77, %78, %cst_24 {dimension_numbers = #tpu.dot_dimension_numbers<[1], [0], [0], [1], [0, 0, 1, 1], [], []>} : vector<128x128xbf16>, vector<128x128xbf16>, vector<128x128xf32> -> vector<128x128xf32>
    %c0_25 = arith.constant 0 : index
    %c0_26 = arith.constant 0 : index
    %80 = vector.load %arg8[%c0_25, %c0_26] : memref<1x128xf32, #tpu.memory_space<vmem>>, vector<1x128xf32>
    %81 = vector.broadcast %80 : vector<1x128xf32> to vector<128x128xf32>
    %82 = arith.addf %79, %81 : vector<128x128xf32>
    %83 = tpu.iota {dimensions = array<i32: 1>} : vector<1x128xi32>
    %c-2048144789_i32_27 = arith.constant -2048144789 : i32
    %84 = vector.broadcast %c-2048144789_i32_27 : i32 to vector<1x128xi32>
    %85 = arith.muli %83, %84 : vector<1x128xi32>
    %c-1028477387_i32_28 = arith.constant -1028477387 : i32
    %86 = arith.muli %0, %c-1028477387_i32_28 : i32
    %87 = vector.broadcast %86 : i32 to vector<1x128xi32>
    %88 = arith.addi %85, %87 : vector<1x128xi32>
    %c2004795789_i32 = arith.constant 2004795789 : i32
    %89 = vector.broadcast %c2004795789_i32 : i32 to vector<1x128xi32>
    %90 = arith.addi %88, %89 : vector<1x128xi32>
    %91 = vector.broadcast %6 : vector<128x1xi32> to vector<128x128xi32>
    %92 = vector.broadcast %90 : vector<1x128xi32> to vector<128x128xi32>
    %93 = arith.addi %91, %92 : vector<128x128xi32>
    %c16_i32_29 = arith.constant 16 : i32
    %94 = vector.broadcast %c16_i32_29 : i32 to vector<128x128xi32>
    %95 = arith.shrui %93, %94 : vector<128x128xi32>
    %96 = arith.xori %93, %95 : vector<128x128xi32>
    %c2146121005_i32_30 = arith.constant 2146121005 : i32
    %97 = vector.broadcast %c2146121005_i32_30 : i32 to vector<128x128xi32>
    %98 = arith.muli %96, %97 : vector<128x128xi32>
    %c15_i32_31 = arith.constant 15 : i32
    %99 = vector.broadcast %c15_i32_31 : i32 to vector<128x128xi32>
    %100 = arith.shrui %98, %99 : vector<128x128xi32>
    %101 = arith.xori %98, %100 : vector<128x128xi32>
    %c-2073254261_i32_32 = arith.constant -2073254261 : i32
    %102 = vector.broadcast %c-2073254261_i32_32 : i32 to vector<128x128xi32>
    %103 = arith.muli %101, %102 : vector<128x128xi32>
    %104 = tpu.bitcast %103 : vector<128x128xi32> -> vector<128x128xi32>
    %c0_i32_33 = arith.constant 0 : i32
    %105 = vector.broadcast %c0_i32_33 : i32 to vector<128x128xi32>
    %106 = arith.cmpi sge, %104, %105 : vector<128x128xi32>
    %cst_34 = arith.constant 0.000000e+00 : f32
    %107 = vector.broadcast %cst_34 : f32 to vector<128x128xf32>
    %108 = arith.cmpf ogt, %82, %107 : vector<128x128xf32>
    %109 = arith.andi %108, %106 : vector<128x128xi1>
    %cst_35 = arith.constant 0.000000e+00 : f32
    %110 = vector.broadcast %cst_35 : f32 to vector<128x128xf32>
    %111 = arith.select %109, %82, %110 : vector<128x128xi1>, vector<128x128xf32>
    %112 = arith.truncf %111 : vector<128x128xf32> to vector<128x128xbf16>
    %c0_36 = arith.constant 0 : index
    %c0_37 = arith.constant 0 : index
    %113 = vector.load %arg9[%c0_36, %c0_37] : memref<128x128xbf16, #tpu.memory_space<vmem>>, vector<128x128xbf16>
    %cst_38 = arith.constant dense<0.000000e+00> : vector<128x128xf32>
    %114 = tpu.matmul %112, %113, %cst_38 {dimension_numbers = #tpu.dot_dimension_numbers<[1], [0], [0], [1], [0, 0, 1, 1], [], []>} : vector<128x128xbf16>, vector<128x128xbf16>, vector<128x128xf32> -> vector<128x128xf32>
    %c0_39 = arith.constant 0 : index
    %c0_40 = arith.constant 0 : index
    %115 = vector.load %arg10[%c0_39, %c0_40] : memref<1x128xf32, #tpu.memory_space<vmem>>, vector<1x128xf32>
    %116 = vector.broadcast %115 : vector<1x128xf32> to vector<128x128xf32>
    %117 = arith.addf %114, %116 : vector<128x128xf32>
    %c0_41 = arith.constant 0 : index
    %c0_42 = arith.constant 0 : index
    %118 = vector.load %arg11[%c0_41, %c0_42] : memref<128x128xf32, #tpu.memory_space<vmem>>, vector<128x128xf32>
    tpu.vector_store %arg11[%c0_41, %c0_42], %117 {strides = array<i32>} : memref<128x128xf32, #tpu.memory_space<vmem>>, vector<128x128xf32>,
    return
  }
  func.func @transform_0(%arg0: i32, %arg1: memref<1xi32, #tpu.memory_space<smem>>) -> (i32, i32) {
    %c0_i32 = arith.constant 0 : i32
    %c0_i32_0 = arith.constant 0 : i32
    return %arg0, %c0_i32 : i32, i32
  }
  func.func @transform_1(%arg0: i32, %arg1: memref<1xi32, #tpu.memory_space<smem>>) -> (i32, i32) {
    %c0_i32 = arith.constant 0 : i32
    %c0_i32_0 = arith.constant 0 : i32
    %c0_i32_1 = arith.constant 0 : i32
    return %c0_i32, %c0_i32_0 : i32, i32
  }
  func.func @transform_2(%arg0: i32, %arg1: memref<1xi32, #tpu.memory_space<smem>>) -> (i32, i32) {
    %c0_i32 = arith.constant 0 : i32
    %c0_i32_0 = arith.constant 0 : i32
    %c0_i32_1 = arith.constant 0 : i32
    return %c0_i32, %c0_i32_0 : i32, i32
  }
  func.func @transform_3(%arg0: i32, %arg1: memref<1xi32, #tpu.memory_space<smem>>) -> (i32, i32) {
    %c0_i32 = arith.constant 0 : i32
    %c0_i32_0 = arith.constant 0 : i32
    %c0_i32_1 = arith.constant 0 : i32
    return %c0_i32, %c0_i32_0 : i32, i32
  }
  func.func @transform_4(%arg0: i32, %arg1: memref<1xi32, #tpu.memory_space<smem>>) -> (i32, i32) {
    %c0_i32 = arith.constant 0 : i32
    %c0_i32_0 = arith.constant 0 : i32
    %c0_i32_1 = arith.constant 0 : i32
    return %c0_i32, %c0_i32_0 : i32, i32
  }
  func.func @transform_5(%arg0: i32, %arg1: memref<1xi32, #tpu.memory_space<smem>>) -> (i32, i32) {
    %c0_i32 = arith.constant 0 : i32
    %c0_i32_0 = arith.constant 0 : i32
    %c0_i32_1 = arith.constant 0 : i32
    return %c0_i32, %c0_i32_0 : i32, i32
  }
  func.func @transform_6(%arg0: i32, %arg1: memref<1xi32, #tpu.memory_space<smem>>) -> (i32, i32) {
    %c0_i32 = arith.constant 0 : i32
    %c0_i32_0 = arith.constant 0 : i32
    %c0_i32_1 = arith.constant 0 : i32
    return %c0_i32, %c0_i32_0 : i32, i32
  }
  func.func @transform_7(%arg0: i32, %arg1: memref<1xi32, #tpu.memory_space<smem>>) -> (i32, i32) {
    %c0_i32 = arith.constant 0 : i32
    %c0_i32_0 = arith.constant 0 : i32
    %c0_i32_1 = arith.constant 0 : i32
    return %c0_i32, %c0_i32_0 : i32, i32
  }
  func.func @transform_8(%arg0: i32, %arg1: memref<1xi32, #tpu.memory_space<smem>>) -> (i32, i32) {
    %c0_i32 = arith.constant 0 : i32
    %c0_i32_0 = arith.constant 0 : i32
    %c0_i32_1 = arith.constant 0 : i32
    return %c0_i32, %c0_i32_0 : i32, i32
  }
  func.func @transform_9(%arg0: i32, %arg1: memref<1xi32, #tpu.memory_space<smem>>) -> (i32, i32) {
    %c0_i32 = arith.constant 0 : i32
    %c0_i32_0 = arith.constant 0 : i32
    return %arg0, %c0_i32 : i32, i32
  }
}

</mosaic_0001>

<llo_original>
// kernel: tpu_custom_call.1
$region0: #{tpu_custom_call.1}
  #allocation0 [shape = 'u32[]', space=smem, size = 0x4, offset = 0x4, fixed_abs, tag = 'smem constant byte address 0x4 - core index']
  #allocation1 [shape = 'u32[144,128]{1,0:T(1,128)}', space=vmem, size = 0x12000, scoped, tag = 'internal scratch']
  #allocation2 [shape = 's32[1]{0}', space=sflag, size = 0x4, scoped, tag = 'scoped memory for tpu_custom_call.1']
  #allocation3 [shape = 's32[1]{0:T(128)S(6)}', space=smem, size = 0x200, scoped, tag = 'prefetched SMEM operand 0']
  %s0 = inlined_call_operand.<no memory space> [shape: s32[1], index: 0, kind: input, shape index: {}]
  %s1 = inlined_call_operand.vmem [shape: bf16[256,784], index: 1, kind: input, shape index: {}]
  %s2 = inlined_call_operand.vmem [shape: bf16[784,256], index: 2, kind: input, shape index: {}]
  %s3 = inlined_call_operand.vmem [shape: f32[1,256], index: 3, kind: input, shape index: {}]
  %s4 = inlined_call_operand.vmem [shape: bf16[256,128], index: 4, kind: input, shape index: {}]
  %s5 = inlined_call_operand.vmem [shape: f32[1,128], index: 5, kind: input, shape index: {}]
  %s6 = inlined_call_operand.vmem [shape: bf16[128,128], index: 6, kind: input, shape index: {}]
  %s7 = inlined_call_operand.vmem [shape: f32[1,128], index: 7, kind: input, shape index: {}]
  %s8 = inlined_call_operand.vmem [shape: bf16[128,128], index: 8, kind: input, shape index: {}]
  %s9 = inlined_call_operand.vmem [shape: f32[1,128], index: 9, kind: input, shape index: {}]
  %s10 = inlined_call_operand.hbm [shape: f32[256,128], index: 10, kind: output, shape index: {}]
  %s11 = sld [smem:[#allocation0]]
  $region69: #{tpu_custom_call.1} parent=0
    _
  %s13 = ssub.s32 1, %s11
  %s14 = scalar_select 0, %s13, %s11
  %15 = sst [smem:[#allocation3]] %s0
  $region1: #{tpu_custom_call.1} parent=0
    #allocation4 [shape = 'u8[131072]{0}', space=vmem, size = 0x20000, scoped, tag = 'output window, operand 0']
    #allocation5 [shape = 's32[2]{0}', space=sflag, size = 0x8, scoped, tag = 'scoped memory for tpu_custom_call.1']
    %16 = vsyncpa [#allocation5], 0
    %s17 = scalar_lea.sflag [#allocation5], 1
    %18 = vsyncpa %s17, 0
    loop: start=0, step=1, limit=4
    $region2: #{tpu_custom_call.1} parent=1 // loop_pre_header
      _
    $region3: #{tpu_custom_call.1} parent=1 // loop_header
      %s20 = sphi 0, %s24
      %p21 = scmp.ge.s32.totalorder %s20, 4
      %s30 = sphi 0, %s32
      %s33 = sphi 0, %s30
      %s34 = sphi 0, %s33
      %s50 = sphi 0, %s34
      %s54 = sphi 0, %s54
      %s56 = sphi 0, %s54
      %s57 = sphi 0, %s56
      %s71 = sphi 0, %s57
      %s75 = sphi 0, %s75
      %s77 = sphi 0, %s75
      %s78 = sphi 0, %s77
      %s92 = sphi 0, %s78
      %s96 = sphi 0, %s96
      %s98 = sphi 0, %s96
      %s99 = sphi 0, %s98
      %s113 = sphi 0, %s99
      %s117 = sphi 0, %s117
      %s119 = sphi 0, %s117
      %s120 = sphi 0, %s119
      %s134 = sphi 0, %s120
      %s138 = sphi 0, %s138
      %s140 = sphi 0, %s138
      %s141 = sphi 0, %s140
      %s155 = sphi 0, %s141
      %s159 = sphi 0, %s159
      %s161 = sphi 0, %s159
      %s162 = sphi 0, %s161
      %s176 = sphi 0, %s162
      %s180 = sphi 0, %s180
      %s182 = sphi 0, %s180
      %s183 = sphi 0, %s182
      %s197 = sphi 0, %s183
      %s201 = sphi 0, %s201
      %s203 = sphi 0, %s201
      %s204 = sphi 0, %s203
      %s218 = sphi 0, %s204
      %s224 = sphi 0, %s226
      %s227 = sphi 0, %s224
      %s228 = sphi 0, %s227
      %s244 = sphi 0, %s228
    $region4: #{tpu_custom_call.1} parent=1 // loop_header_branch
      %23 = sbr.rel (%p21) target = $region8
    $region5: #{tpu_custom_call.1} parent=1 // loop_body
      %s25 = ssub.s32 %s20, 1
      %s26 = ssub.s32 %s20, 2
      %s27 = sadd.s32 %s20, 1
      %s28 = ssub.s32 %s20, %s27
      %p29 = scmp.eq.s32.totalorder %s28, 0
      %s31 = sadd.s32 %s30, 1
      %s32 = scalar_select %p29, %s30, %s31
      %p35 = pneg %p29
      %p36 = scmp.eq.s32.totalorder %s20, 1
      %p37 = por %p35, %p36
      %p38 = scmp.ne.s32.totalorder %s30, %s33
      %p39 = scmp.eq.s32.totalorder %s20, 0
      %p40 = por %p38, %p39
      %p41 = scmp.ne.s32.totalorder %s30, %s33
      %p42 = scmp.eq.s32.totalorder %s25, 1
      %p43 = por %p41, %p42
      %p44 = scmp.ne.s32.totalorder %s33, %s34
      %p45 = scmp.eq.s32.totalorder %s25, 0
      %p46 = por %p44, %p45
      %p47 = scmp.ne.s32.totalorder %s33, %s34
      %p48 = scmp.eq.s32.totalorder %s26, 1
      %p49 = por %p47, %p48
      %p51 = scmp.ne.s32.totalorder %s34, %s50
      %p52 = scmp.eq.s32.totalorder %s26, 0
      %p53 = por %p51, %p52
      %s55 = sadd.s32 %s54, 1
      %p58 = scmp.eq.s32.totalorder %s20, 1
      %p59 = scmp.ne.s32.totalorder %s54, %s56
      %p60 = scmp.eq.s32.totalorder %s20, 0
      %p61 = por %p59, %p60
      %p62 = scmp.ne.s32.totalorder %s54, %s56
      %p63 = scmp.eq.s32.totalorder %s25, 1
      %p64 = por %p62, %p63
      %p65 = scmp.ne.s32.totalorder %s56, %s57
      %p66 = scmp.eq.s32.totalorder %s25, 0
      %p67 = por %p65, %p66
      %p68 = scmp.ne.s32.totalorder %s56, %s57
      %p69 = scmp.eq.s32.totalorder %s26, 1
      %p70 = por %p68, %p69
      %p72 = scmp.ne.s32.totalorder %s57, %s71
      %p73 = scmp.eq.s32.totalorder %s26, 0
      %p74 = por %p72, %p73
      %s76 = sadd.s32 %s75, 1
      %p79 = scmp.eq.s32.totalorder %s20, 1
      %p80 = scmp.ne.s32.totalorder %s75, %s77
      %p81 = scmp.eq.s32.totalorder %s20, 0
      %p82 = por %p80, %p81
      %p83 = scmp.ne.s32.totalorder %s75, %s77
      %p84 = scmp.eq.s32.totalorder %s25, 1
      %p85 = por %p83, %p84
      %p86 = scmp.ne.s32.totalorder %s77, %s78
      %p87 = scmp.eq.s32.totalorder %s25, 0
      %p88 = por %p86, %p87
      %p89 = scmp.ne.s32.totalorder %s77, %s78
      %p90 = scmp.eq.s32.totalorder %s26, 1
      %p91 = por %p89, %p90
      %p93 = scmp.ne.s32.totalorder %s78, %s92
      %p94 = scmp.eq.s32.totalorder %s26, 0
      %p95 = por %p93, %p94
      %s97 = sadd.s32 %s96, 1
      %p100 = scmp.eq.s32.totalorder %s20, 1
      %p101 = scmp.ne.s32.totalorder %s96, %s98
      %p102 = scmp.eq.s32.totalorder %s20, 0
      %p103 = por %p101, %p102
      %p104 = scmp.ne.s32.totalorder %s96, %s98
      %p105 = scmp.eq.s32.totalorder %s25, 1
      %p106 = por %p104, %p105
      %p107 = scmp.ne.s32.totalorder %s98, %s99
      %p108 = scmp.eq.s32.totalorder %s25, 0
      %p109 = por %p107, %p108
      %p110 = scmp.ne.s32.totalorder %s98, %s99
      %p111 = scmp.eq.s32.totalorder %s26, 1
      %p112 = por %p110, %p111
      %p114 = scmp.ne.s32.totalorder %s99, %s113
      %p115 = scmp.eq.s32.totalorder %s26, 0
      %p116 = por %p114, %p115
      %s118 = sadd.s32 %s117, 1
      %p121 = scmp.eq.s32.totalorder %s20, 1
      %p122 = scmp.ne.s32.totalorder %s117, %s119
      %p123 = scmp.eq.s32.totalorder %s20, 0
      %p124 = por %p122, %p123
      %p125 = scmp.ne.s32.totalorder %s117, %s119
      %p126 = scmp.eq.s32.totalorder %s25, 1
      %p127 = por %p125, %p126
      %p128 = scmp.ne.s32.totalorder %s119, %s120
      %p129 = scmp.eq.s32.totalorder %s25, 0
      %p130 = por %p128, %p129
      %p131 = scmp.ne.s32.totalorder %s119, %s120
      %p132 = scmp.eq.s32.totalorder %s26, 1
      %p133 = por %p131, %p132
      %p135 = scmp.ne.s32.totalorder %s120, %s134
      %p136 = scmp.eq.s32.totalorder %s26, 0
      %p137 = por %p135, %p136
      %s139 = sadd.s32 %s138, 1
      %p142 = scmp.eq.s32.totalorder %s20, 1
      %p143 = scmp.ne.s32.totalorder %s138, %s140
      %p144 = scmp.eq.s32.totalorder %s20, 0
      %p145 = por %p143, %p144
      %p146 = scmp.ne.s32.totalorder %s138, %s140
      %p147 = scmp.eq.s32.totalorder %s25, 1
      %p148 = por %p146, %p147
      %p149 = scmp.ne.s32.totalorder %s140, %s141
      %p150 = scmp.eq.s32.totalorder %s25, 0
      %p151 = por %p149, %p150
      %p152 = scmp.ne.s32.totalorder %s140, %s141
      %p153 = scmp.eq.s32.totalorder %s26, 1
      %p154 = por %p152, %p153
      %p156 = scmp.ne.s32.totalorder %s141, %s155
      %p157 = scmp.eq.s32.totalorder %s26, 0
      %p158 = por %p156, %p157
      %s160 = sadd.s32 %s159, 1
      %p163 = scmp.eq.s32.totalorder %s20, 1
      %p164 = scmp.ne.s32.totalorder %s159, %s161
      %p165 = scmp.eq.s32.totalorder %s20, 0
      %p166 = por %p164, %p165
      %p167 = scmp.ne.s32.totalorder %s159, %s161
      %p168 = scmp.eq.s32.totalorder %s25, 1
      %p169 = por %p167, %p168
      %p170 = scmp.ne.s32.totalorder %s161, %s162
      %p171 = scmp.eq.s32.totalorder %s25, 0
      %p172 = por %p170, %p171
      %p173 = scmp.ne.s32.totalorder %s161, %s162
      %p174 = scmp.eq.s32.totalorder %s26, 1
      %p175 = por %p173, %p174
      %p177 = scmp.ne.s32.totalorder %s162, %s176
      %p178 = scmp.eq.s32.totalorder %s26, 0
      %p179 = por %p177, %p178
      %s181 = sadd.s32 %s180, 1
      %p184 = scmp.eq.s32.totalorder %s20, 1
      %p185 = scmp.ne.s32.totalorder %s180, %s182
      %p186 = scmp.eq.s32.totalorder %s20, 0
      %p187 = por %p185, %p186
      %p188 = scmp.ne.s32.totalorder %s180, %s182
      %p189 = scmp.eq.s32.totalorder %s25, 1
      %p190 = por %p188, %p189
      %p191 = scmp.ne.s32.totalorder %s182, %s183
      %p192 = scmp.eq.s32.totalorder %s25, 0
      %p193 = por %p191, %p192
      %p194 = scmp.ne.s32.totalorder %s182, %s183
      %p195 = scmp.eq.s32.totalorder %s26, 1
      %p196 = por %p194, %p195
      %p198 = scmp.ne.s32.totalorder %s183, %s197
      %p199 = scmp.eq.s32.totalorder %s26, 0
      %p200 = por %p198, %p199
      %s202 = sadd.s32 %s201, 1
      %p205 = scmp.eq.s32.totalorder %s20, 1
      %p206 = scmp.ne.s32.totalorder %s201, %s203
      %p207 = scmp.eq.s32.totalorder %s20, 0
      %p208 = por %p206, %p207
      %p209 = scmp.ne.s32.totalorder %s201, %s203
      %p210 = scmp.eq.s32.totalorder %s25, 1
      %p211 = por %p209, %p210
      %p212 = scmp.ne.s32.totalorder %s203, %s204
      %p213 = scmp.eq.s32.totalorder %s25, 0
      %p214 = por %p212, %p213
      %p215 = scmp.ne.s32.totalorder %s203, %s204
      %p216 = scmp.eq.s32.totalorder %s26, 1
      %p217 = por %p215, %p216
      %p219 = scmp.ne.s32.totalorder %s204, %s218
      %p220 = scmp.eq.s32.totalorder %s26, 0
      %p221 = por %p219, %p220
      %s222 = ssub.s32 %s20, %s27
      %p223 = scmp.eq.s32.totalorder %s222, 0
      %s225 = sadd.s32 %s224, 1
      %s226 = scalar_select %p223, %s224, %s225
      %p229 = pneg %p223
      %p230 = scmp.eq.s32.totalorder %s20, 1
      %p231 = por %p229, %p230
      %p232 = scmp.ne.s32.totalorder %s224, %s227
      %p233 = scmp.eq.s32.totalorder %s20, 0
      %p234 = por %p232, %p233
      %p235 = scmp.ne.s32.totalorder %s224, %s227
      %p236 = scmp.eq.s32.totalorder %s25, 1
      %p237 = por %p235, %p236
      %p238 = scmp.ne.s32.totalorder %s227, %s228
      %p239 = scmp.eq.s32.totalorder %s25, 0
      %p240 = por %p238, %p239
      %p241 = scmp.ne.s32.totalorder %s227, %s228
      %p242 = scmp.eq.s32.totalorder %s26, 1
      %p243 = por %p241, %p242
      %p245 = scmp.ne.s32.totalorder %s228, %s244
      %p246 = scmp.eq.s32.totalorder %s26, 0
      %p247 = por %p245, %p246
      %p248 = scmp.le.s32.totalorder 1, %s20
      %p249 = scmp.lt.s32.totalorder %s20, 3
      %p250 = pnand %p248, %p249
      %p251 = pneg %p250
      // Predicated region
      $region9: #{tpu_custom_call.1} parent=5 // pred_check
        _
      $region10: #{tpu_custom_call.1} parent=5 // pred_check_branch
        %253 = sbr.rel (%p250) target = $region12
      $region11: #{tpu_custom_call.1} parent=5 // pred_region
        %s254 = ssub.s32 %s20, 1
        // Predicated region
        $region13: #{tpu_custom_call.1} parent=11 // pred_check
          %p255 = pneg %p67
        $region14: #{tpu_custom_call.1} parent=11 // pred_check_branch
          %257 = sbr.rel (%p255) target = $region16
        $region15: #{tpu_custom_call.1} parent=11 // pred_region
          _
        $region16: #{tpu_custom_call.1} parent=11 // pred_fallthru
          _
        // Predicated region
        $region17: #{tpu_custom_call.1} parent=11 // pred_check
          %p258 = pneg %p88
        $region18: #{tpu_custom_call.1} parent=11 // pred_check_branch
          %260 = sbr.rel (%p258) target = $region20
        $region19: #{tpu_custom_call.1} parent=11 // pred_region
          _
        $region20: #{tpu_custom_call.1} parent=11 // pred_fallthru
          _
        // Predicated region
        $region21: #{tpu_custom_call.1} parent=11 // pred_check
          %p261 = pneg %p109
        $region22: #{tpu_custom_call.1} parent=11 // pred_check_branch
          %263 = sbr.rel (%p261) target = $region24
        $region23: #{tpu_custom_call.1} parent=11 // pred_region
          _
        $region24: #{tpu_custom_call.1} parent=11 // pred_fallthru
          _
        // Predicated region
        $region25: #{tpu_custom_call.1} parent=11 // pred_check
          %p264 = pneg %p130
        $region26: #{tpu_custom_call.1} parent=11 // pred_check_branch
          %266 = sbr.rel (%p264) target = $region28
        $region27: #{tpu_custom_call.1} parent=11 // pred_region
          _
        $region28: #{tpu_custom_call.1} parent=11 // pred_fallthru
          _
        // Predicated region
        $region29: #{tpu_custom_call.1} parent=11 // pred_check
          %p267 = pneg %p151
        $region30: #{tpu_custom_call.1} parent=11 // pred_check_branch
          %269 = sbr.rel (%p267) target = $region32
        $region31: #{tpu_custom_call.1} parent=11 // pred_region
          _
        $region32: #{tpu_custom_call.1} parent=11 // pred_fallthru
          _
        // Predicated region
        $region33: #{tpu_custom_call.1} parent=11 // pred_check
          %p270 = pneg %p172
        $region34: #{tpu_custom_call.1} parent=11 // pred_check_branch
          %272 = sbr.rel (%p270) target = $region36
        $region35: #{tpu_custom_call.1} parent=11 // pred_region
          _
        $region36: #{tpu_custom_call.1} parent=11 // pred_fallthru
          _
        // Predicated region
        $region37: #{tpu_custom_call.1} parent=11 // pred_check
          %p273 = pneg %p193
        $region38: #{tpu_custom_call.1} parent=11 // pred_check_branch
          %275 = sbr.rel (%p273) target = $region40
        $region39: #{tpu_custom_call.1} parent=11 // pred_region
          _
        $region40: #{tpu_custom_call.1} parent=11 // pred_fallthru
          _
        // Predicated region
        $region41: #{tpu_custom_call.1} parent=11 // pred_check
          %p276 = pneg %p214
        $region42: #{tpu_custom_call.1} parent=11 // pred_check_branch
          %278 = sbr.rel (%p276) target = $region44
        $region43: #{tpu_custom_call.1} parent=11 // pred_region
          _
        $region44: #{tpu_custom_call.1} parent=11 // pred_fallthru
          _
      $region12: #{tpu_custom_call.1} parent=5 // pred_fallthru
        _
      %p279 = scmp.lt.s32.totalorder %s20, 2
      // Predicated region
      $region45: #{tpu_custom_call.1} parent=5 // pred_check
        %p280 = pneg %p279
      $region46: #{tpu_custom_call.1} parent=5 // pred_check_branch
        %282 = sbr.rel (%p280) target = $region48
      $region47: #{tpu_custom_call.1} parent=5 // pred_region
        // Predicated region
        $region49: #{tpu_custom_call.1} parent=47 // pred_check
          %p283 = pneg %p40
        $region50: #{tpu_custom_call.1} parent=47 // pred_check_branch
          %285 = sbr.rel (%p283) target = $region52
        $region51: #{tpu_custom_call.1} parent=47 // pred_region
          %s286 = smul.u32 16, %s20
          %p287 = scmp.lt.s32.totalorder %s286, 31
          %s288 = scalar_select %p287, %s286, 31
          %s289 = smul.addr %s288, 7
          %s290 = smul.addr %s289, 4
          %s291 = scalar_lea.vmem %s1, %s290
          %s292 = smul.u32 16, %s20
        $region52: #{tpu_custom_call.1} parent=47 // pred_fallthru
          _
      $region48: #{tpu_custom_call.1} parent=5 // pred_fallthru
        _
      %p293 = scmp.le.s32.totalorder 1, %s20
      %p294 = scmp.lt.s32.totalorder %s20, 3
      %p295 = pnand %p293, %p294
      %p296 = pneg %p295
      // Predicated region
      $region53: #{tpu_custom_call.1} parent=5 // pred_check
        _
      $region54: #{tpu_custom_call.1} parent=5 // pred_check_branch
        %298 = sbr.rel (%p295) target = $region56
      $region55: #{tpu_custom_call.1} parent=5 // pred_region
        %s299 = ssub.s32 %s20, 1
        %s300 = smul.u32 16, %s25
        %p301 = scmp.lt.s32.totalorder %s300, 31
        %s302 = scalar_select %p301, %s300, 31
        %s303 = smul.addr %s302, 7
        %s304 = smul.addr %s303, 4
        %s305 = scalar_lea.vmem %s1, %s304
        %p306 = pneg %p46
        %p307 = pneg %p43
        %p308 = pneg %p67
        %p309 = pneg %p64
        %p310 = pneg %p88
        %p311 = pneg %p85
        %p312 = pneg %p109
        %p313 = pneg %p106
        %p314 = pneg %p130
        %p315 = pneg %p127
        %p316 = pneg %p151
        %p317 = pneg %p148
        %p318 = pneg %p172
        %p319 = pneg %p169
        %p320 = pneg %p193
        %p321 = pneg %p190
        %p322 = pneg %p214
        %p323 = pneg %p211
        %p324 = pneg %p240
        %p325 = pneg %p237
        %s326 = sand.u32 %s227, 1
        %s327 = scalar_lea.sflag [#allocation5], %s326
        %s328 = sand.u32 %s227, 1
        %s329 = smul.addr %s328, 128
        %s330 = scalar_lea.vmem [#allocation4], %s329
        %s331 = smul.u32 16, %s25
        %p332 = scmp.lt.s32.totalorder %s331, 31
        %s333 = scalar_select %p332, %s331, 31
        %s334 = smul.addr %s333, 7
        %s335 = smul.addr %s334, 4
        %s336 = scalar_lea.vmem %s1, %s335
        %s337 = smul.u32 16, %s25
        %s338 = smul.u32 16, %s25
        %s340 = sld [smem:[#allocation3]]
        %s341 = smul.u32 %s25, 128
        %v342 = vlaneseq
        %v343 = vshrl.u32 %v342, 7
        %v344 = vadd.s32 %v343, 8
        %v345 = vadd.s32 %v343, 16
        %v346 = vadd.s32 %v343, 24
        %v347 = vadd.s32 %v343, 32
        %v348 = vadd.s32 %v343, 40
        %v349 = vadd.s32 %v343, 48
        %v350 = vadd.s32 %v343, 56
        %v351 = vadd.s32 %v343, 64
        %v352 = vadd.s32 %v343, 72
        %v353 = vadd.s32 %v343, 80
        %v354 = vadd.s32 %v343, 88
        %v355 = vadd.s32 %v343, 96
        %v356 = vadd.s32 %v343, 104
        %v357 = vadd.s32 %v343, 112
        %v358 = vadd.s32 %v343, 120
        %v359 = vstv %s341
        %v360 = vadd.s32 %v343, %v359
        %v361 = vadd.s32 %v344, %v359
        %v362 = vadd.s32 %v345, %v359
        %v363 = vadd.s32 %v346, %v359
        %v364 = vadd.s32 %v347, %v359
        %v365 = vadd.s32 %v348, %v359
        %v366 = vadd.s32 %v349, %v359
        %v367 = vadd.s32 %v350, %v359
        %v368 = vadd.s32 %v351, %v359
        %v369 = vadd.s32 %v352, %v359
        %v370 = vadd.s32 %v353, %v359
        %v371 = vadd.s32 %v354, %v359
        %v372 = vadd.s32 %v355, %v359
        %v373 = vadd.s32 %v356, %v359
        %v374 = vadd.s32 %v357, %v359
        %v375 = vadd.s32 %v358, %v359
        %v376 = vmul.u32 %v360, 2654435769
        %v377 = vmul.u32 %v361, 2654435769
        %v378 = vmul.u32 %v362, 2654435769
        %v379 = vmul.u32 %v363, 2654435769
        %v380 = vmul.u32 %v364, 2654435769
        %v381 = vmul.u32 %v365, 2654435769
        %v382 = vmul.u32 %v366, 2654435769
        %v383 = vmul.u32 %v367, 2654435769
        %v384 = vmul.u32 %v368, 2654435769
        %v385 = vmul.u32 %v369, 2654435769
        %v386 = vmul.u32 %v370, 2654435769
        %v387 = vmul.u32 %v371, 2654435769
        %v388 = vmul.u32 %v372, 2654435769
        %v389 = vmul.u32 %v373, 2654435769
        %v390 = vmul.u32 %v374, 2654435769
        %v391 = vmul.u32 %v375, 2654435769
        %v392 = vld [vmem:[%s336] sm:$0xff]
        %v393 = vld [vmem:[%s336 + $0x8] sm:$0xff]
        %v394 = vld [vmem:[%s336 + $0x10] sm:$0xff]
        %v395 = vld [vmem:[%s336 + $0x18] sm:$0xf]
        %v396 = vld [vmem:[%s336 + $0x1c] sm:$0xff]
        %v397 = vld [vmem:[%s336 + $0x24] sm:$0xff]
        %v398 = vld [vmem:[%s336 + $0x2c] sm:$0xff]
        %v399 = vld [vmem:[%s336 + $0x34] sm:$0xf]
        %v400 = vld [vmem:[%s336 + $0x38] sm:$0xff]
        %v401 = vld [vmem:[%s336 + $0x40] sm:$0xff]
        %v402 = vld [vmem:[%s336 + $0x48] sm:$0xff]
        %v403 = vld [vmem:[%s336 + $0x50] sm:$0xf]
        %v404 = vld [vmem:[%s336 + $0x54] sm:$0xff]
        %v405 = vld [vmem:[%s336 + $0x5c] sm:$0xff]
        %v406 = vld [vmem:[%s336 + $0x64] sm:$0xff]
        %v407 = vld [vmem:[%s336 + $0x6c] sm:$0xf]
        %v408 = vld [vmem:[%s336 + $0x70] sm:$0xff]
        %v409 = vld [vmem:[%s336 + $0x78] sm:$0xff]
        %v410 = vld [vmem:[%s336 + $0x80] sm:$0xff]
        %v411 = vld [vmem:[%s336 + $0x88] sm:$0xf]
        %v412 = vld [vmem:[%s336 + $0x8c] sm:$0xff]
        %v413 = vld [vmem:[%s336 + $0x94] sm:$0xff]
        %v414 = vld [vmem:[%s336 + $0x9c] sm:$0xff]
        %v415 = vld [vmem:[%s336 + $0xa4] sm:$0xf]
        %v416 = vld [vmem:[%s336 + $0xa8] sm:$0xff]
        %v417 = vld [vmem:[%s336 + $0xb0] sm:$0xff]
        %v418 = vld [vmem:[%s336 + $0xb8] sm:$0xff]
        %v419 = vld [vmem:[%s336 + $0xc0] sm:$0xf]
        %v420 = vld [vmem:[%s336 + $0xc4] sm:$0xff]
        %v421 = vld [vmem:[%s336 + $0xcc] sm:$0xff]
        %v422 = vld [vmem:[%s336 + $0xd4] sm:$0xff]
        %v423 = vld [vmem:[%s336 + $0xdc] sm:$0xf]
        %v424 = vld [vmem:[%s336 + $0xe0] sm:$0xff]
        %v425 = vld [vmem:[%s336 + $0xe8] sm:$0xff]
        %v426 = vld [vmem:[%s336 + $0xf0] sm:$0xff]
        %v427 = vld [vmem:[%s336 + $0xf8] sm:$0xf]
        %v428 = vld [vmem:[%s336 + $0xfc] sm:$0xff]
        %v429 = vld [vmem:[%s336 + $0x104] sm:$0xff]
        %v430 = vld [vmem:[%s336 + $0x10c] sm:$0xff]
        %v431 = vld [vmem:[%s336 + $0x114] sm:$0xf]
        %v432 = vld [vmem:[%s336 + $0x118] sm:$0xff]
        %v433 = vld [vmem:[%s336 + $0x120] sm:$0xff]
        %v434 = vld [vmem:[%s336 + $0x128] sm:$0xff]
        %v435 = vld [vmem:[%s336 + $0x130] sm:$0xf]
        %v436 = vld [vmem:[%s336 + $0x134] sm:$0xff]
        %v437 = vld [vmem:[%s336 + $0x13c] sm:$0xff]
        %v438 = vld [vmem:[%s336 + $0x144] sm:$0xff]
        %v439 = vld [vmem:[%s336 + $0x14c] sm:$0xf]
        %v440 = vld [vmem:[%s336 + $0x150] sm:$0xff]
        %v441 = vld [vmem:[%s336 + $0x158] sm:$0xff]
        %v442 = vld [vmem:[%s336 + $0x160] sm:$0xff]
        %v443 = vld [vmem:[%s336 + $0x168] sm:$0xf]
        %v444 = vld [vmem:[%s336 + $0x16c] sm:$0xff]
        %v445 = vld [vmem:[%s336 + $0x174] sm:$0xff]
        %v446 = vld [vmem:[%s336 + $0x17c] sm:$0xff]
        %v447 = vld [vmem:[%s336 + $0x184] sm:$0xf]
        %v448 = vld [vmem:[%s336 + $0x188] sm:$0xff]
        %v449 = vld [vmem:[%s336 + $0x190] sm:$0xff]
        %v450 = vld [vmem:[%s336 + $0x198] sm:$0xff]
        %v451 = vld [vmem:[%s336 + $0x1a0] sm:$0xf]
        %v452 = vld [vmem:[%s336 + $0x1a4] sm:$0xff]
        %v453 = vld [vmem:[%s336 + $0x1ac] sm:$0xff]
        %v454 = vld [vmem:[%s336 + $0x1b4] sm:$0xff]
        %v455 = vld [vmem:[%s336 + $0x1bc] sm:$0xf]
        %v456 = vld [vmem:[%s2] sm:$0xff]
        %v457 = vld [vmem:[%s2 + $0x8] sm:$0xff]
        %v458 = vld [vmem:[%s2 + $0x10] sm:$0xff]
        %v459 = vld [vmem:[%s2 + $0x18] sm:$0xff]
        %v460 = vld [vmem:[%s2 + $0x20] sm:$0xff]
        %v461 = vld [vmem:[%s2 + $0x28] sm:$0xff]
        %v462 = vld [vmem:[%s2 + $0x30] sm:$0xff]
        %v463 = vld [vmem:[%s2 + $0x38] sm:$0xff]
        %v464 = vld [vmem:[%s2 + $0x40] sm:$0xff]
        %v465 = vld [vmem:[%s2 + $0x48] sm:$0xff]
        %v466 = vld [vmem:[%s2 + $0x50] sm:$0xff]
        %v467 = vld [vmem:[%s2 + $0x58] sm:$0xff]
        %v468 = vld [vmem:[%s2 + $0x60] sm:$0xff]
        %v469 = vld [vmem:[%s2 + $0x68] sm:$0xff]
        %v470 = vld [vmem:[%s2 + $0x70] sm:$0xff]
        %v471 = vld [vmem:[%s2 + $0x78] sm:$0xff]
        %v472 = vld [vmem:[%s2 + $0x80] sm:$0xff]
        %v473 = vld [vmem:[%s2 + $0x88] sm:$0xff]
        %v474 = vld [vmem:[%s2 + $0x90] sm:$0xff]
        %v475 = vld [vmem:[%s2 + $0x98] sm:$0xff]
        %v476 = vld [vmem:[%s2 + $0xa0] sm:$0xff]
        %v477 = vld [vmem:[%s2 + $0xa8] sm:$0xff]
        %v478 = vld [vmem:[%s2 + $0xb0] sm:$0xff]
        %v479 = vld [vmem:[%s2 + $0xb8] sm:$0xff]
        %v480 = vld [vmem:[%s2 + $0xc0] sm:$0xff]
        %v481 = vld [vmem:[%s2 + $0xc8] sm:$0xff]
        %v482 = vld [vmem:[%s2 + $0xd0] sm:$0xff]
        %v483 = vld [vmem:[%s2 + $0xd8] sm:$0xff]
        %v484 = vld [vmem:[%s2 + $0xe0] sm:$0xff]
        %v485 = vld [vmem:[%s2 + $0xe8] sm:$0xff]
        %v486 = vld [vmem:[%s2 + $0xf0] sm:$0xff]
        %v487 = vld [vmem:[%s2 + $0xf8] sm:$0xff]
        %v488 = vld [vmem:[%s2 + $0x100] sm:$0xff]
        %v489 = vld [vmem:[%s2 + $0x108] sm:$0xff]
        %v490 = vld [vmem:[%s2 + $0x110] sm:$0xff]
        %v491 = vld [vmem:[%s2 + $0x118] sm:$0xff]
        %v492 = vld [vmem:[%s2 + $0x120] sm:$0xff]
        %v493 = vld [vmem:[%s2 + $0x128] sm:$0xff]
        %v494 = vld [vmem:[%s2 + $0x130] sm:$0xff]
        %v495 = vld [vmem:[%s2 + $0x138] sm:$0xff]
        %v496 = vld [vmem:[%s2 + $0x140] sm:$0xff]
        %v497 = vld [vmem:[%s2 + $0x148] sm:$0xff]
        %v498 = vld [vmem:[%s2 + $0x150] sm:$0xff]
        %v499 = vld [vmem:[%s2 + $0x158] sm:$0xff]
        %v500 = vld [vmem:[%s2 + $0x160] sm:$0xff]
        %v501 = vld [vmem:[%s2 + $0x168] sm:$0xff]
        %v502 = vld [vmem:[%s2 + $0x170] sm:$0xff]
        %v503 = vld [vmem:[%s2 + $0x178] sm:$0xff]
        %v504 = vld [vmem:[%s2 + $0x180] sm:$0xff]
        %v505 = vld [vmem:[%s2 + $0x188] sm:$0xff]
        %v506 = vld [vmem:[%s2 + $0x190] sm:$0xff]
        %v507 = vld [vmem:[%s2 + $0x198] sm:$0xff]
        %v508 = vld [vmem:[%s2 + $0x1a0] sm:$0xff]
        %v509 = vld [vmem:[%s2 + $0x1a8] sm:$0xff]
        %v510 = vld [vmem:[%s2 + $0x1b0] sm:$0xff]
        %v511 = vld [vmem:[%s2 + $0x1b8] sm:$0xff]
        %v512 = vld [vmem:[%s2 + $0x1c0] sm:$0xff]
        %v513 = vld [vmem:[%s2 + $0x1c8] sm:$0xff]
        %v514 = vld [vmem:[%s2 + $0x1d0] sm:$0xff]
        %v515 = vld [vmem:[%s2 + $0x1d8] sm:$0xff]
        %v516 = vld [vmem:[%s2 + $0x1e0] sm:$0xff]
        %v517 = vld [vmem:[%s2 + $0x1e8] sm:$0xff]
        %v518 = vld [vmem:[%s2 + $0x1f0] sm:$0xff]
        %v519 = vld [vmem:[%s2 + $0x1f8] sm:$0xff]
        %v520 = vld [vmem:[%s2 + $0x200] sm:$0xff]
        %v521 = vld [vmem:[%s2 + $0x208] sm:$0xff]
        %v522 = vld [vmem:[%s2 + $0x210] sm:$0xff]
        %v523 = vld [vmem:[%s2 + $0x218] sm:$0xff]
        %v524 = vld [vmem:[%s2 + $0x220] sm:$0xff]
        %v525 = vld [vmem:[%s2 + $0x228] sm:$0xff]
        %v526 = vld [vmem:[%s2 + $0x230] sm:$0xff]
        %v527 = vld [vmem:[%s2 + $0x238] sm:$0xff]
        %v528 = vld [vmem:[%s2 + $0x240] sm:$0xff]
        %v529 = vld [vmem:[%s2 + $0x248] sm:$0xff]
        %v530 = vld [vmem:[%s2 + $0x250] sm:$0xff]
        %v531 = vld [vmem:[%s2 + $0x258] sm:$0xff]
        %v532 = vld [vmem:[%s2 + $0x260] sm:$0xff]
        %v533 = vld [vmem:[%s2 + $0x268] sm:$0xff]
        %v534 = vld [vmem:[%s2 + $0x270] sm:$0xff]
        %v535 = vld [vmem:[%s2 + $0x278] sm:$0xff]
        %v536 = vld [vmem:[%s2 + $0x280] sm:$0xff]
        %v537 = vld [vmem:[%s2 + $0x288] sm:$0xff]
        %v538 = vld [vmem:[%s2 + $0x290] sm:$0xff]
        %v539 = vld [vmem:[%s2 + $0x298] sm:$0xff]
        %v540 = vld [vmem:[%s2 + $0x2a0] sm:$0xff]
        %v541 = vld [vmem:[%s2 + $0x2a8] sm:$0xff]
        %v542 = vld [vmem:[%s2 + $0x2b0] sm:$0xff]
        %v543 = vld [vmem:[%s2 + $0x2b8] sm:$0xff]
        %v544 = vld [vmem:[%s2 + $0x2c0] sm:$0xff]
        %v545 = vld [vmem:[%s2 + $0x2c8] sm:$0xff]
        %v546 = vld [vmem:[%s2 + $0x2d0] sm:$0xff]
        %v547 = vld [vmem:[%s2 + $0x2d8] sm:$0xff]
        %v548 = vld [vmem:[%s2 + $0x2e0] sm:$0xff]
        %v549 = vld [vmem:[%s2 + $0x2e8] sm:$0xff]
        %v550 = vld [vmem:[%s2 + $0x2f0] sm:$0xff]
        %v551 = vld [vmem:[%s2 + $0x2f8] sm:$0xff]
        %v552 = vld [vmem:[%s2 + $0x300] sm:$0xff]
        %v553 = vld [vmem:[%s2 + $0x308] sm:$0xff]
        %v554 = vld [vmem:[%s3] sm:$0x3]
        %v556 = vlaneseq
        %v557 = vshrl.u32 %v556, 7
        %v558 = vsub.s32 0, %v557
        %v559 = vrot.slane %v554, %v558
        %v560 = vlaneseq
        %v561 = vshrl.u32 %v560, 7
        %v562 = vsub.s32 1, %v561
        %v563 = vrot.slane %v554, %v562
        %v630 = vunpack.c.l.b16 %v392
        %v631 = vunpack.c.h.b16 %v392
        %v632 = vunpack.c.l.b16 %v393
        %v633 = vunpack.c.h.b16 %v393
        %v634 = vunpack.c.l.b16 %v394
        %v635 = vunpack.c.h.b16 %v394
        %v636 = vunpack.c.l.b16 %v395
        %v637 = vunpack.c.l.b16 %v396
        %v638 = vunpack.c.h.b16 %v396
        %v639 = vunpack.c.l.b16 %v397
        %v640 = vunpack.c.h.b16 %v397
        %v641 = vunpack.c.l.b16 %v398
        %v642 = vunpack.c.h.b16 %v398
        %v643 = vunpack.c.l.b16 %v399
        %v644 = vunpack.c.l.b16 %v400
        %v645 = vunpack.c.h.b16 %v400
        %v646 = vunpack.c.l.b16 %v401
        %v647 = vunpack.c.h.b16 %v401
        %v648 = vunpack.c.l.b16 %v402
        %v649 = vunpack.c.h.b16 %v402
        %v650 = vunpack.c.l.b16 %v403
        %v651 = vunpack.c.l.b16 %v404
        %v652 = vunpack.c.h.b16 %v404
        %v653 = vunpack.c.l.b16 %v405
        %v654 = vunpack.c.h.b16 %v405
        %v655 = vunpack.c.l.b16 %v406
        %v656 = vunpack.c.h.b16 %v406
        %v657 = vunpack.c.l.b16 %v407
        %v658 = vunpack.c.l.b16 %v408
        %v659 = vunpack.c.h.b16 %v408
        %v660 = vunpack.c.l.b16 %v409
        %v661 = vunpack.c.h.b16 %v409
        %v662 = vunpack.c.l.b16 %v410
        %v663 = vunpack.c.h.b16 %v410
        %v664 = vunpack.c.l.b16 %v411
        %v665 = vunpack.c.l.b16 %v412
        %v666 = vunpack.c.h.b16 %v412
        %v667 = vunpack.c.l.b16 %v413
        %v668 = vunpack.c.h.b16 %v413
        %v669 = vunpack.c.l.b16 %v414
        %v670 = vunpack.c.h.b16 %v414
        %v671 = vunpack.c.l.b16 %v415
        %v672 = vunpack.c.l.b16 %v416
        %v673 = vunpack.c.h.b16 %v416
        %v674 = vunpack.c.l.b16 %v417
        %v675 = vunpack.c.h.b16 %v417
        %v676 = vunpack.c.l.b16 %v418
        %v677 = vunpack.c.h.b16 %v418
        %v678 = vunpack.c.l.b16 %v419
        %v679 = vunpack.c.l.b16 %v420
        %v680 = vunpack.c.h.b16 %v420
        %v681 = vunpack.c.l.b16 %v421
        %v682 = vunpack.c.h.b16 %v421
        %v683 = vunpack.c.l.b16 %v422
        %v684 = vunpack.c.h.b16 %v422
        %v685 = vunpack.c.l.b16 %v423
        %v686 = vunpack.c.l.b16 %v424
        %v687 = vunpack.c.h.b16 %v424
        %v688 = vunpack.c.l.b16 %v425
        %v689 = vunpack.c.h.b16 %v425
        %v690 = vunpack.c.l.b16 %v426
        %v691 = vunpack.c.h.b16 %v426
        %v692 = vunpack.c.l.b16 %v427
        %v693 = vunpack.c.l.b16 %v428
        %v694 = vunpack.c.h.b16 %v428
        %v695 = vunpack.c.l.b16 %v429
        %v696 = vunpack.c.h.b16 %v429
        %v697 = vunpack.c.l.b16 %v430
        %v698 = vunpack.c.h.b16 %v430
        %v699 = vunpack.c.l.b16 %v431
        %v700 = vunpack.c.l.b16 %v432
        %v701 = vunpack.c.h.b16 %v432
        %v702 = vunpack.c.l.b16 %v433
        %v703 = vunpack.c.h.b16 %v433
        %v704 = vunpack.c.l.b16 %v434
        %v705 = vunpack.c.h.b16 %v434
        %v706 = vunpack.c.l.b16 %v435
        %v707 = vunpack.c.l.b16 %v436
        %v708 = vunpack.c.h.b16 %v436
        %v709 = vunpack.c.l.b16 %v437
        %v710 = vunpack.c.h.b16 %v437
        %v711 = vunpack.c.l.b16 %v438
        %v712 = vunpack.c.h.b16 %v438
        %v713 = vunpack.c.l.b16 %v439
        %v714 = vunpack.c.l.b16 %v440
        %v715 = vunpack.c.h.b16 %v440
        %v716 = vunpack.c.l.b16 %v441
        %v717 = vunpack.c.h.b16 %v441
        %v718 = vunpack.c.l.b16 %v442
        %v719 = vunpack.c.h.b16 %v442
        %v720 = vunpack.c.l.b16 %v443
        %v721 = vunpack.c.l.b16 %v444
        %v722 = vunpack.c.h.b16 %v444
        %v723 = vunpack.c.l.b16 %v445
        %v724 = vunpack.c.h.b16 %v445
        %v725 = vunpack.c.l.b16 %v446
        %v726 = vunpack.c.h.b16 %v446
        %v727 = vunpack.c.l.b16 %v447
        %v728 = vunpack.c.l.b16 %v448
        %v729 = vunpack.c.h.b16 %v448
        %v730 = vunpack.c.l.b16 %v449
        %v731 = vunpack.c.h.b16 %v449
        %v732 = vunpack.c.l.b16 %v450
        %v733 = vunpack.c.h.b16 %v450
        %v734 = vunpack.c.l.b16 %v451
        %v735 = vunpack.c.l.b16 %v452
        %v736 = vunpack.c.h.b16 %v452
        %v737 = vunpack.c.l.b16 %v453
        %v738 = vunpack.c.h.b16 %v453
        %v739 = vunpack.c.l.b16 %v454
        %v740 = vunpack.c.h.b16 %v454
        %v741 = vunpack.c.l.b16 %v455
        %v742 = vpack.c.b16 %v637, %v630
        %v743 = vpack.c.b16 %v638, %v631
        %v744 = vpack.c.b16 %v639, %v632
        %v745 = vpack.c.b16 %v640, %v633
        %v746 = vpack.c.b16 %v641, %v634
        %v747 = vpack.c.b16 %v642, %v635
        %v748 = vpack.c.b16 %v643, %v636
        %v749 = vpack.c.b16 %v651, %v644
        %v750 = vpack.c.b16 %v652, %v645
        %v751 = vpack.c.b16 %v653, %v646
        %v752 = vpack.c.b16 %v654, %v647
        %v753 = vpack.c.b16 %v655, %v648
        %v754 = vpack.c.b16 %v656, %v649
        %v755 = vpack.c.b16 %v657, %v650
        %v756 = vpack.c.b16 %v665, %v658
        %v757 = vpack.c.b16 %v666, %v659
        %v758 = vpack.c.b16 %v667, %v660
        %v759 = vpack.c.b16 %v668, %v661
        %v760 = vpack.c.b16 %v669, %v662
        %v761 = vpack.c.b16 %v670, %v663
        %v762 = vpack.c.b16 %v671, %v664
        %v763 = vpack.c.b16 %v679, %v672
        %v764 = vpack.c.b16 %v680, %v673
        %v765 = vpack.c.b16 %v681, %v674
        %v766 = vpack.c.b16 %v682, %v675
        %v767 = vpack.c.b16 %v683, %v676
        %v768 = vpack.c.b16 %v684, %v677
        %v769 = vpack.c.b16 %v685, %v678
        %v770 = vpack.c.b16 %v693, %v686
        %v771 = vpack.c.b16 %v694, %v687
        %v772 = vpack.c.b16 %v695, %v688
        %v773 = vpack.c.b16 %v696, %v689
        %v774 = vpack.c.b16 %v697, %v690
        %v775 = vpack.c.b16 %v698, %v691
        %v776 = vpack.c.b16 %v699, %v692
        %v777 = vpack.c.b16 %v707, %v700
        %v778 = vpack.c.b16 %v708, %v701
        %v779 = vpack.c.b16 %v709, %v702
        %v780 = vpack.c.b16 %v710, %v703
        %v781 = vpack.c.b16 %v711, %v704
        %v782 = vpack.c.b16 %v712, %v705
        %v783 = vpack.c.b16 %v713, %v706
        %v784 = vpack.c.b16 %v721, %v714
        %v785 = vpack.c.b16 %v722, %v715
        %v786 = vpack.c.b16 %v723, %v716
        %v787 = vpack.c.b16 %v724, %v717
        %v788 = vpack.c.b16 %v725, %v718
        %v789 = vpack.c.b16 %v726, %v719
        %v790 = vpack.c.b16 %v727, %v720
        %v791 = vpack.c.b16 %v735, %v728
        %v792 = vpack.c.b16 %v736, %v729
        %v793 = vpack.c.b16 %v737, %v730
        %v794 = vpack.c.b16 %v738, %v731
        %v795 = vpack.c.b16 %v739, %v732
        %v796 = vpack.c.b16 %v740, %v733
        %v797 = vpack.c.b16 %v741, %v734
        %v944 = vunpack.c.l.b16 %v456
        %v945 = vunpack.c.h.b16 %v456
        %v946 = vunpack.c.l.b16 %v457
        %v947 = vunpack.c.h.b16 %v457
        %v948 = vunpack.c.l.b16 %v458
        %v949 = vunpack.c.h.b16 %v458
        %v950 = vunpack.c.l.b16 %v459
        %v951 = vunpack.c.h.b16 %v459
        %v952 = vunpack.c.l.b16 %v460
        %v953 = vunpack.c.h.b16 %v460
        %v954 = vunpack.c.l.b16 %v461
        %v955 = vunpack.c.h.b16 %v461
        %v956 = vunpack.c.l.b16 %v462
        %v957 = vunpack.c.h.b16 %v462
        %v958 = vunpack.c.l.b16 %v463
        %v959 = vunpack.c.h.b16 %v463
        %v960 = vunpack.c.l.b16 %v464
        %v961 = vunpack.c.h.b16 %v464
        %v962 = vunpack.c.l.b16 %v465
        %v963 = vunpack.c.h.b16 %v465
        %v964 = vunpack.c.l.b16 %v466
        %v965 = vunpack.c.h.b16 %v466
        %v966 = vunpack.c.l.b16 %v467
        %v967 = vunpack.c.h.b16 %v467
        %v968 = vunpack.c.l.b16 %v468
        %v969 = vunpack.c.h.b16 %v468
        %v970 = vunpack.c.l.b16 %v469
        %v971 = vunpack.c.h.b16 %v469
        %v972 = vunpack.c.l.b16 %v470
        %v973 = vunpack.c.h.b16 %v470
        %v974 = vunpack.c.l.b16 %v471
        %v975 = vunpack.c.h.b16 %v471
        %v976 = vunpack.c.l.b16 %v472
        %v977 = vunpack.c.h.b16 %v472
        %v978 = vunpack.c.l.b16 %v473
        %v979 = vunpack.c.h.b16 %v473
        %v980 = vunpack.c.l.b16 %v474
        %v981 = vunpack.c.h.b16 %v474
        %v982 = vunpack.c.l.b16 %v475
        %v983 = vunpack.c.h.b16 %v475
        %v984 = vunpack.c.l.b16 %v476
        %v985 = vunpack.c.h.b16 %v476
        %v986 = vunpack.c.l.b16 %v477
        %v987 = vunpack.c.h.b16 %v477
        %v988 = vunpack.c.l.b16 %v478
        %v989 = vunpack.c.h.b16 %v478
        %v990 = vunpack.c.l.b16 %v479
        %v991 = vunpack.c.h.b16 %v479
        %v992 = vunpack.c.l.b16 %v480
        %v993 = vunpack.c.h.b16 %v480
        %v994 = vunpack.c.l.b16 %v481
        %v995 = vunpack.c.h.b16 %v481
        %v996 = vunpack.c.l.b16 %v482
        %v997 = vunpack.c.h.b16 %v482
        %v998 = vunpack.c.l.b16 %v483
        %v999 = vunpack.c.h.b16 %v483
        %v1000 = vunpack.c.l.b16 %v484
        %v1001 = vunpack.c.h.b16 %v484
        %v1002 = vunpack.c.l.b16 %v485
        %v1003 = vunpack.c.h.b16 %v485
        %v1004 = vunpack.c.l.b16 %v486
        %v1005 = vunpack.c.h.b16 %v486
        %v1006 = vunpack.c.l.b16 %v487
        %v1007 = vunpack.c.h.b16 %v487
        %v1008 = vunpack.c.l.b16 %v488
        %v1009 = vunpack.c.h.b16 %v488
        %v1010 = vunpack.c.l.b16 %v489
        %v1011 = vunpack.c.h.b16 %v489
        %v1012 = vunpack.c.l.b16 %v490
        %v1013 = vunpack.c.h.b16 %v490
        %v1014 = vunpack.c.l.b16 %v491
        %v1015 = vunpack.c.h.b16 %v491
        %v1016 = vunpack.c.l.b16 %v492
        %v1017 = vunpack.c.h.b16 %v492
        %v1018 = vunpack.c.l.b16 %v493
        %v1019 = vunpack.c.h.b16 %v493
        %v1020 = vunpack.c.l.b16 %v494
        %v1021 = vunpack.c.h.b16 %v494
        %v1022 = vunpack.c.l.b16 %v495
        %v1023 = vunpack.c.h.b16 %v495
        %v1024 = vunpack.c.l.b16 %v496
        %v1025 = vunpack.c.h.b16 %v496
        %v1026 = vunpack.c.l.b16 %v497
        %v1027 = vunpack.c.h.b16 %v497
        %v1028 = vunpack.c.l.b16 %v498
        %v1029 = vunpack.c.h.b16 %v498
        %v1030 = vunpack.c.l.b16 %v499
        %v1031 = vunpack.c.h.b16 %v499
        %v1032 = vunpack.c.l.b16 %v500
        %v1033 = vunpack.c.h.b16 %v500
        %v1034 = vunpack.c.l.b16 %v501
        %v1035 = vunpack.c.h.b16 %v501
        %v1036 = vunpack.c.l.b16 %v502
        %v1037 = vunpack.c.h.b16 %v502
        %v1038 = vunpack.c.l.b16 %v503
        %v1039 = vunpack.c.h.b16 %v503
        %v1040 = vunpack.c.l.b16 %v504
        %v1041 = vunpack.c.h.b16 %v504
        %v1042 = vunpack.c.l.b16 %v505
        %v1043 = vunpack.c.h.b16 %v505
        %v1044 = vunpack.c.l.b16 %v506
        %v1045 = vunpack.c.h.b16 %v506
        %v1046 = vunpack.c.l.b16 %v507
        %v1047 = vunpack.c.h.b16 %v507
        %v1048 = vunpack.c.l.b16 %v508
        %v1049 = vunpack.c.h.b16 %v508
        %v1050 = vunpack.c.l.b16 %v509
        %v1051 = vunpack.c.h.b16 %v509
        %v1052 = vunpack.c.l.b16 %v510
        %v1053 = vunpack.c.h.b16 %v510
        %v1054 = vunpack.c.l.b16 %v511
        %v1055 = vunpack.c.h.b16 %v511
        %v1056 = vunpack.c.l.b16 %v512
        %v1057 = vunpack.c.h.b16 %v512
        %v1058 = vunpack.c.l.b16 %v513
        %v1059 = vunpack.c.h.b16 %v513
        %v1060 = vunpack.c.l.b16 %v514
        %v1061 = vunpack.c.h.b16 %v514
        %v1062 = vunpack.c.l.b16 %v515
        %v1063 = vunpack.c.h.b16 %v515
        %v1064 = vunpack.c.l.b16 %v516
        %v1065 = vunpack.c.h.b16 %v516
        %v1066 = vunpack.c.l.b16 %v517
        %v1067 = vunpack.c.h.b16 %v517
        %v1068 = vunpack.c.l.b16 %v518
        %v1069 = vunpack.c.h.b16 %v518
        %v1070 = vunpack.c.l.b16 %v519
        %v1071 = vunpack.c.h.b16 %v519
        %v1072 = vunpack.c.l.b16 %v520
        %v1073 = vunpack.c.h.b16 %v520
        %v1074 = vunpack.c.l.b16 %v521
        %v1075 = vunpack.c.h.b16 %v521
        %v1076 = vunpack.c.l.b16 %v522
        %v1077 = vunpack.c.h.b16 %v522
        %v1078 = vunpack.c.l.b16 %v523
        %v1079 = vunpack.c.h.b16 %v523
        %v1080 = vunpack.c.l.b16 %v524
        %v1081 = vunpack.c.h.b16 %v524
        %v1082 = vunpack.c.l.b16 %v525
        %v1083 = vunpack.c.h.b16 %v525
        %v1084 = vunpack.c.l.b16 %v526
        %v1085 = vunpack.c.h.b16 %v526
        %v1086 = vunpack.c.l.b16 %v527
        %v1087 = vunpack.c.h.b16 %v527
        %v1088 = vunpack.c.l.b16 %v528
        %v1089 = vunpack.c.h.b16 %v528
        %v1090 = vunpack.c.l.b16 %v529
        %v1091 = vunpack.c.h.b16 %v529
        %v1092 = vunpack.c.l.b16 %v530
        %v1093 = vunpack.c.h.b16 %v530
        %v1094 = vunpack.c.l.b16 %v531
        %v1095 = vunpack.c.h.b16 %v531
        %v1096 = vunpack.c.l.b16 %v532
        %v1097 = vunpack.c.h.b16 %v532
        %v1098 = vunpack.c.l.b16 %v533
        %v1099 = vunpack.c.h.b16 %v533
        %v1100 = vunpack.c.l.b16 %v534
        %v1101 = vunpack.c.h.b16 %v534
        %v1102 = vunpack.c.l.b16 %v535
        %v1103 = vunpack.c.h.b16 %v535
        %v1104 = vunpack.c.l.b16 %v536
        %v1105 = vunpack.c.h.b16 %v536
        %v1106 = vunpack.c.l.b16 %v537
        %v1107 = vunpack.c.h.b16 %v537
        %v1108 = vunpack.c.l.b16 %v538
        %v1109 = vunpack.c.h.b16 %v538
        %v1110 = vunpack.c.l.b16 %v539
        %v1111 = vunpack.c.h.b16 %v539
        %v1112 = vunpack.c.l.b16 %v540
        %v1113 = vunpack.c.h.b16 %v540
        %v1114 = vunpack.c.l.b16 %v541
        %v1115 = vunpack.c.h.b16 %v541
        %v1116 = vunpack.c.l.b16 %v542
        %v1117 = vunpack.c.h.b16 %v542
        %v1118 = vunpack.c.l.b16 %v543
        %v1119 = vunpack.c.h.b16 %v543
        %v1120 = vunpack.c.l.b16 %v544
        %v1121 = vunpack.c.h.b16 %v544
        %v1122 = vunpack.c.l.b16 %v545
        %v1123 = vunpack.c.h.b16 %v545
        %v1124 = vunpack.c.l.b16 %v546
        %v1125 = vunpack.c.h.b16 %v546
        %v1126 = vunpack.c.l.b16 %v547
        %v1127 = vunpack.c.h.b16 %v547
        %v1128 = vunpack.c.l.b16 %v548
        %v1129 = vunpack.c.h.b16 %v548
        %v1130 = vunpack.c.l.b16 %v549
        %v1131 = vunpack.c.h.b16 %v549
        %v1132 = vunpack.c.l.b16 %v550
        %v1133 = vunpack.c.h.b16 %v550
        %v1134 = vunpack.c.l.b16 %v551
        %v1135 = vunpack.c.h.b16 %v551
        %v1136 = vunpack.c.l.b16 %v552
        %v1137 = vunpack.c.h.b16 %v552
        %v1138 = vunpack.c.l.b16 %v553
        %v1139 = vunpack.c.h.b16 %v553
        %v1140 = vpack.c.b16 %v946, %v944
        %v1141 = vpack.c.b16 %v947, %v945
        %v1142 = vpack.c.b16 %v950, %v948
        %v1143 = vpack.c.b16 %v951, %v949
        %v1144 = vpack.c.b16 %v954, %v952
        %v1145 = vpack.c.b16 %v955, %v953
        %v1146 = vpack.c.b16 %v958, %v956
        %v1147 = vpack.c.b16 %v959, %v957
        %v1148 = vpack.c.b16 %v962, %v960
        %v1149 = vpack.c.b16 %v963, %v961
        %v1150 = vpack.c.b16 %v966, %v964
        %v1151 = vpack.c.b16 %v967, %v965
        %v1152 = vpack.c.b16 %v970, %v968
        %v1153 = vpack.c.b16 %v971, %v969
        %v1154 = vpack.c.b16 %v974, %v972
        %v1155 = vpack.c.b16 %v975, %v973
        %v1156 = vpack.c.b16 %v978, %v976
        %v1157 = vpack.c.b16 %v979, %v977
        %v1158 = vpack.c.b16 %v982, %v980
        %v1159 = vpack.c.b16 %v983, %v981
        %v1160 = vpack.c.b16 %v986, %v984
        %v1161 = vpack.c.b16 %v987, %v985
        %v1162 = vpack.c.b16 %v990, %v988
        %v1163 = vpack.c.b16 %v991, %v989
        %v1164 = vpack.c.b16 %v994, %v992
        %v1165 = vpack.c.b16 %v995, %v993
        %v1166 = vpack.c.b16 %v998, %v996
        %v1167 = vpack.c.b16 %v999, %v997
        %v1168 = vpack.c.b16 %v1002, %v1000
        %v1169 = vpack.c.b16 %v1003, %v1001
        %v1170 = vpack.c.b16 %v1006, %v1004
        %v1171 = vpack.c.b16 %v1007, %v1005
        %v1172 = vpack.c.b16 %v1010, %v1008
        %v1173 = vpack.c.b16 %v1011, %v1009
        %v1174 = vpack.c.b16 %v1014, %v1012
        %v1175 = vpack.c.b16 %v1015, %v1013
        %v1176 = vpack.c.b16 %v1018, %v1016
        %v1177 = vpack.c.b16 %v1019, %v1017
        %v1178 = vpack.c.b16 %v1022, %v1020
        %v1179 = vpack.c.b16 %v1023, %v1021
        %v1180 = vpack.c.b16 %v1026, %v1024
        %v1181 = vpack.c.b16 %v1027, %v1025
        %v1182 = vpack.c.b16 %v1030, %v1028
        %v1183 = vpack.c.b16 %v1031, %v1029
        %v1184 = vpack.c.b16 %v1034, %v1032
        %v1185 = vpack.c.b16 %v1035, %v1033
        %v1186 = vpack.c.b16 %v1038, %v1036
        %v1187 = vpack.c.b16 %v1039, %v1037
        %v1188 = vpack.c.b16 %v1042, %v1040
        %v1189 = vpack.c.b16 %v1043, %v1041
        %v1190 = vpack.c.b16 %v1046, %v1044
        %v1191 = vpack.c.b16 %v1047, %v1045
        %v1192 = vpack.c.b16 %v1050, %v1048
        %v1193 = vpack.c.b16 %v1051, %v1049
        %v1194 = vpack.c.b16 %v1054, %v1052
        %v1195 = vpack.c.b16 %v1055, %v1053
        %v1196 = vpack.c.b16 %v1058, %v1056
        %v1197 = vpack.c.b16 %v1059, %v1057
        %v1198 = vpack.c.b16 %v1062, %v1060
        %v1199 = vpack.c.b16 %v1063, %v1061
        %v1200 = vpack.c.b16 %v1066, %v1064
        %v1201 = vpack.c.b16 %v1067, %v1065
        %v1202 = vpack.c.b16 %v1070, %v1068
        %v1203 = vpack.c.b16 %v1071, %v1069
        %v1204 = vpack.c.b16 %v1074, %v1072
        %v1205 = vpack.c.b16 %v1075, %v1073
        %v1206 = vpack.c.b16 %v1078, %v1076
        %v1207 = vpack.c.b16 %v1079, %v1077
        %v1208 = vpack.c.b16 %v1082, %v1080
        %v1209 = vpack.c.b16 %v1083, %v1081
        %v1210 = vpack.c.b16 %v1086, %v1084
        %v1211 = vpack.c.b16 %v1087, %v1085
        %v1212 = vpack.c.b16 %v1090, %v1088
        %v1213 = vpack.c.b16 %v1091, %v1089
        %v1214 = vpack.c.b16 %v1094, %v1092
        %v1215 = vpack.c.b16 %v1095, %v1093
        %v1216 = vpack.c.b16 %v1098, %v1096
        %v1217 = vpack.c.b16 %v1099, %v1097
        %v1218 = vpack.c.b16 %v1102, %v1100
        %v1219 = vpack.c.b16 %v1103, %v1101
        %v1220 = vpack.c.b16 %v1106, %v1104
        %v1221 = vpack.c.b16 %v1107, %v1105
        %v1222 = vpack.c.b16 %v1110, %v1108
        %v1223 = vpack.c.b16 %v1111, %v1109
        %v1224 = vpack.c.b16 %v1114, %v1112
        %v1225 = vpack.c.b16 %v1115, %v1113
        %v1226 = vpack.c.b16 %v1118, %v1116
        %v1227 = vpack.c.b16 %v1119, %v1117
        %v1228 = vpack.c.b16 %v1122, %v1120
        %v1229 = vpack.c.b16 %v1123, %v1121
        %v1230 = vpack.c.b16 %v1126, %v1124
        %v1231 = vpack.c.b16 %v1127, %v1125
        %v1232 = vpack.c.b16 %v1130, %v1128
        %v1233 = vpack.c.b16 %v1131, %v1129
        %v1234 = vpack.c.b16 %v1134, %v1132
        %v1235 = vpack.c.b16 %v1135, %v1133
        %v1236 = vpack.c.b16 %v1138, %v1136
        %v1237 = vpack.c.b16 %v1139, %v1137
        %vm1336 = vcmask 130048
        %v1338 = vsel %vm1336, %v748, 0
        %v1341 = vsel %vm1336, %v755, 0
        %v1344 = vsel %vm1336, %v762, 0
        %v1347 = vsel %vm1336, %v769, 0
        %v1350 = vsel %vm1336, %v776, 0
        %v1353 = vsel %vm1336, %v783, 0
        %v1356 = vsel %vm1336, %v790, 0
        %v1359 = vsel %vm1336, %v797, 0
        %1361 = vmatprep.subr.bf16.mxu0 %v1155
        %1362 = vmatpush1.bf16.msra.mxu0 %v1154
        %1363 = vmatprep.subr.bf16.mxu0 %v1153
        %1364 = vmatpush1.bf16.msra.mxu0 %v1152
        %1365 = vmatprep.subr.bf16.mxu0 %v1151
        %1366 = vmatpush1.bf16.msra.mxu0 %v1150
        %1367 = vmatprep.subr.bf16.mxu0 %v1149
        %1368 = vmatpush1.bf16.msra.mxu0 %v1148
        %1369 = vmatprep.subr.bf16.mxu0 %v1147
        %1370 = vmatpush1.bf16.msra.mxu0 %v1146
        %1371 = vmatprep.subr.bf16.mxu0 %v1145
        %1372 = vmatpush1.bf16.msra.mxu0 %v1144
        %1373 = vmatprep.subr.bf16.mxu0 %v1143
        %1374 = vmatpush1.bf16.msra.mxu0 %v1142
        %1375 = vmatprep.subr.bf16.mxu0 %v1141
        %1376 = vmatpush1.bf16.msra.mxu0 %v1140
        %1377 = vmatprep.subr.bf16.mxu0 %v1171
        %1378 = vmatpush2.bf16.msra.mxu0 %v1170
        %1379 = vmatprep.subr.bf16.mxu0 %v1169
        %1380 = vmatpush2.bf16.msra.mxu0 %v1168
        %1381 = vmatprep.subr.bf16.mxu0 %v1167
        %1382 = vmatpush2.bf16.msra.mxu0 %v1166
        %1383 = vmatprep.subr.bf16.mxu0 %v1165
        %1384 = vmatpush2.bf16.msra.mxu0 %v1164
        %1385 = vmatprep.subr.bf16.mxu0 %v1163
        %1386 = vmatpush2.bf16.msra.mxu0 %v1162
        %1387 = vmatprep.subr.bf16.mxu0 %v1161
        %1388 = vmatpush2.bf16.msra.mxu0 %v1160
        %1389 = vmatprep.subr.bf16.mxu0 %v1159
        %1390 = vmatpush2.bf16.msra.mxu0 %v1158
        %1391 = vmatprep.subr.bf16.mxu0 %v1157
        %1392 = vmatpush2.bf16.msra.mxu0 %v1156
        %1393 = vmatprep.mubr.bf16.mxu0 %v743
        %1394 = vmatmul.mubr.bf16.gmra.mxu0 %v742
        %v1395 = vpop.f32.mrf.mxu0
        %v1396 = vadd.f32 %v559, %v1395
        %v1397 = vpop.f32.mrf.mxu0
        %v1398 = vadd.f32 %v563, %v1397
        %v1399 = vpop.f32.mrf.mxu0
        %v1400 = vadd.f32 %v559, %v1399
        %v1401 = vpop.f32.mrf.mxu0
        %v1402 = vadd.f32 %v563, %v1401
        %1403 = vmatprep.mubr.bf16.mxu0 %v750
        %1404 = vmatmul.mubr.bf16.gmra.mxu0 %v749
        %v1405 = vpop.f32.mrf.mxu0
        %v1406 = vadd.f32 %v559, %v1405
        %v1407 = vpop.f32.mrf.mxu0
        %v1408 = vadd.f32 %v563, %v1407
        %v1409 = vpop.f32.mrf.mxu0
        %v1410 = vadd.f32 %v559, %v1409
        %v1411 = vpop.f32.mrf.mxu0
        %v1412 = vadd.f32 %v563, %v1411
        %1413 = vmatprep.mubr.bf16.mxu0 %v757
        %1414 = vmatmul.mubr.bf16.gmra.mxu0 %v756
        %v1415 = vpop.f32.mrf.mxu0
        %v1416 = vadd.f32 %v559, %v1415
        %v1417 = vpop.f32.mrf.mxu0
        %v1418 = vadd.f32 %v563, %v1417
        %v1419 = vpop.f32.mrf.mxu0
        %v1420 = vadd.f32 %v559, %v1419
        %v1421 = vpop.f32.mrf.mxu0
        %v1422 = vadd.f32 %v563, %v1421
        %1423 = vmatprep.mubr.bf16.mxu0 %v764
        %1424 = vmatmul.mubr.bf16.gmra.mxu0 %v763
        %v1425 = vpop.f32.mrf.mxu0
        %v1426 = vadd.f32 %v559, %v1425
        %v1427 = vpop.f32.mrf.mxu0
        %v1428 = vadd.f32 %v563, %v1427
        %v1429 = vpop.f32.mrf.mxu0
        %v1430 = vadd.f32 %v559, %v1429
        %v1431 = vpop.f32.mrf.mxu0
        %v1432 = vadd.f32 %v563, %v1431
        %1433 = vmatprep.mubr.bf16.mxu0 %v771
        %1434 = vmatmul.mubr.bf16.gmra.mxu0 %v770
        %v1435 = vpop.f32.mrf.mxu0
        %v1436 = vadd.f32 %v559, %v1435
        %v1437 = vpop.f32.mrf.mxu0
        %v1438 = vadd.f32 %v563, %v1437
        %v1439 = vpop.f32.mrf.mxu0
        %v1440 = vadd.f32 %v559, %v1439
        %v1441 = vpop.f32.mrf.mxu0
        %v1442 = vadd.f32 %v563, %v1441
        %1443 = vmatprep.mubr.bf16.mxu0 %v778
        %1444 = vmatmul.mubr.bf16.gmra.mxu0 %v777
        %v1445 = vpop.f32.mrf.mxu0
        %v1446 = vadd.f32 %v559, %v1445
        %v1447 = vpop.f32.mrf.mxu0
        %v1448 = vadd.f32 %v563, %v1447
        %v1449 = vpop.f32.mrf.mxu0
        %v1450 = vadd.f32 %v559, %v1449
        %v1451 = vpop.f32.mrf.mxu0
        %v1452 = vadd.f32 %v563, %v1451
        %1453 = vmatprep.mubr.bf16.mxu0 %v785
        %1454 = vmatmul.mubr.bf16.gmra.mxu0 %v784
        %v1455 = vpop.f32.mrf.mxu0
        %v1456 = vadd.f32 %v559, %v1455
        %v1457 = vpop.f32.mrf.mxu0
        %v1458 = vadd.f32 %v563, %v1457
        %v1459 = vpop.f32.mrf.mxu0
        %v1460 = vadd.f32 %v559, %v1459
        %v1461 = vpop.f32.mrf.mxu0
        %v1462 = vadd.f32 %v563, %v1461
        %1463 = vmatprep.mubr.bf16.mxu0 %v792
        %1464 = vmatmul.mubr.bf16.gmra.mxu0 %v791
        %v1465 = vpop.f32.mrf.mxu0
        %v1466 = vadd.f32 %v559, %v1465
        %v1467 = vpop.f32.mrf.mxu0
        %v1468 = vadd.f32 %v563, %v1467
        %v1469 = vpop.f32.mrf.mxu0
        %v1470 = vadd.f32 %v559, %v1469
        %v1471 = vpop.f32.mrf.mxu0
        %v1472 = vadd.f32 %v563, %v1471
        %1473 = vdwg.mxu0
        %1474 = vmatprep.subr.bf16.mxu0 %v1187
        %1475 = vmatpush1.bf16.msra.mxu0 %v1186
        %1476 = vmatprep.subr.bf16.mxu0 %v1185
        %1477 = vmatpush1.bf16.msra.mxu0 %v1184
        %1478 = vmatprep.subr.bf16.mxu0 %v1183
        %1479 = vmatpush1.bf16.msra.mxu0 %v1182
        %1480 = vmatprep.subr.bf16.mxu0 %v1181
        %1481 = vmatpush1.bf16.msra.mxu0 %v1180
        %1482 = vmatprep.subr.bf16.mxu0 %v1179
        %1483 = vmatpush1.bf16.msra.mxu0 %v1178
        %1484 = vmatprep.subr.bf16.mxu0 %v1177
        %1485 = vmatpush1.bf16.msra.mxu0 %v1176
        %1486 = vmatprep.subr.bf16.mxu0 %v1175
        %1487 = vmatpush1.bf16.msra.mxu0 %v1174
        %1488 = vmatprep.subr.bf16.mxu0 %v1173
        %1489 = vmatpush1.bf16.msra.mxu0 %v1172
        %1490 = vmatprep.subr.bf16.mxu0 %v1203
        %1491 = vmatpush2.bf16.msra.mxu0 %v1202
        %1492 = vmatprep.subr.bf16.mxu0 %v1201
        %1493 = vmatpush2.bf16.msra.mxu0 %v1200
        %1494 = vmatprep.subr.bf16.mxu0 %v1199
        %1495 = vmatpush2.bf16.msra.mxu0 %v1198
        %1496 = vmatprep.subr.bf16.mxu0 %v1197
        %1497 = vmatpush2.bf16.msra.mxu0 %v1196
        %1498 = vmatprep.subr.bf16.mxu0 %v1195
        %1499 = vmatpush2.bf16.msra.mxu0 %v1194
        %1500 = vmatprep.subr.bf16.mxu0 %v1193
        %1501 = vmatpush2.bf16.msra.mxu0 %v1192
        %1502 = vmatprep.subr.bf16.mxu0 %v1191
        %1503 = vmatpush2.bf16.msra.mxu0 %v1190
        %1504 = vmatprep.subr.bf16.mxu0 %v1189
        %1505 = vmatpush2.bf16.msra.mxu0 %v1188
        %1506 = vmatprep.mubr.bf16.mxu0 %v745
        %1507 = vmatmul.mubr.bf16.gmra.mxu0 %v744
        %v1508 = vpop.f32.mrf.mxu0
        %v1509 = vadd.f32 %v1396, %v1508
        %v1510 = vpop.f32.mrf.mxu0
        %v1511 = vadd.f32 %v1398, %v1510
        %v1512 = vpop.f32.mrf.mxu0
        %v1513 = vadd.f32 %v1400, %v1512
        %v1514 = vpop.f32.mrf.mxu0
        %v1515 = vadd.f32 %v1402, %v1514
        %1516 = vmatprep.mubr.bf16.mxu0 %v752
        %1517 = vmatmul.mubr.bf16.gmra.mxu0 %v751
        %v1518 = vpop.f32.mrf.mxu0
        %v1519 = vadd.f32 %v1406, %v1518
        %v1520 = vpop.f32.mrf.mxu0
        %v1521 = vadd.f32 %v1408, %v1520
        %v1522 = vpop.f32.mrf.mxu0
        %v1523 = vadd.f32 %v1410, %v1522
        %v1524 = vpop.f32.mrf.mxu0
        %v1525 = vadd.f32 %v1412, %v1524
        %1526 = vmatprep.mubr.bf16.mxu0 %v759
        %1527 = vmatmul.mubr.bf16.gmra.mxu0 %v758
        %v1528 = vpop.f32.mrf.mxu0
        %v1529 = vadd.f32 %v1416, %v1528
        %v1530 = vpop.f32.mrf.mxu0
        %v1531 = vadd.f32 %v1418, %v1530
        %v1532 = vpop.f32.mrf.mxu0
        %v1533 = vadd.f32 %v1420, %v1532
        %v1534 = vpop.f32.mrf.mxu0
        %v1535 = vadd.f32 %v1422, %v1534
        %1536 = vmatprep.mubr.bf16.mxu0 %v766
        %1537 = vmatmul.mubr.bf16.gmra.mxu0 %v765
        %v1538 = vpop.f32.mrf.mxu0
        %v1539 = vadd.f32 %v1426, %v1538
        %v1540 = vpop.f32.mrf.mxu0
        %v1541 = vadd.f32 %v1428, %v1540
        %v1542 = vpop.f32.mrf.mxu0
        %v1543 = vadd.f32 %v1430, %v1542
        %v1544 = vpop.f32.mrf.mxu0
        %v1545 = vadd.f32 %v1432, %v1544
        %1546 = vmatprep.mubr.bf16.mxu0 %v773
        %1547 = vmatmul.mubr.bf16.gmra.mxu0 %v772
        %v1548 = vpop.f32.mrf.mxu0
        %v1549 = vadd.f32 %v1436, %v1548
        %v1550 = vpop.f32.mrf.mxu0
        %v1551 = vadd.f32 %v1438, %v1550
        %v1552 = vpop.f32.mrf.mxu0
        %v1553 = vadd.f32 %v1440, %v1552
        %v1554 = vpop.f32.mrf.mxu0
        %v1555 = vadd.f32 %v1442, %v1554
        %1556 = vmatprep.mubr.bf16.mxu0 %v780
        %1557 = vmatmul.mubr.bf16.gmra.mxu0 %v779
        %v1558 = vpop.f32.mrf.mxu0
        %v1559 = vadd.f32 %v1446, %v1558
        %v1560 = vpop.f32.mrf.mxu0
        %v1561 = vadd.f32 %v1448, %v1560
        %v1562 = vpop.f32.mrf.mxu0
        %v1563 = vadd.f32 %v1450, %v1562
        %v1564 = vpop.f32.mrf.mxu0
        %v1565 = vadd.f32 %v1452, %v1564
        %1566 = vmatprep.mubr.bf16.mxu0 %v787
        %1567 = vmatmul.mubr.bf16.gmra.mxu0 %v786
        %v1568 = vpop.f32.mrf.mxu0
        %v1569 = vadd.f32 %v1456, %v1568
        %v1570 = vpop.f32.mrf.mxu0
        %v1571 = vadd.f32 %v1458, %v1570
        %v1572 = vpop.f32.mrf.mxu0
        %v1573 = vadd.f32 %v1460, %v1572
        %v1574 = vpop.f32.mrf.mxu0
        %v1575 = vadd.f32 %v1462, %v1574
        %1576 = vmatprep.mubr.bf16.mxu0 %v794
        %1577 = vmatmul.mubr.bf16.gmra.mxu0 %v793
        %v1578 = vpop.f32.mrf.mxu0
        %v1579 = vadd.f32 %v1466, %v1578
        %v1580 = vpop.f32.mrf.mxu0
        %v1581 = vadd.f32 %v1468, %v1580
        %v1582 = vpop.f32.mrf.mxu0
        %v1583 = vadd.f32 %v1470, %v1582
        %v1584 = vpop.f32.mrf.mxu0
        %v1585 = vadd.f32 %v1472, %v1584
        %1586 = vdwg.mxu0
        %1587 = vmatprep.subr.bf16.mxu0 %v1219
        %1588 = vmatpush1.bf16.msra.mxu0 %v1218
        %1589 = vmatprep.subr.bf16.mxu0 %v1217
        %1590 = vmatpush1.bf16.msra.mxu0 %v1216
        %1591 = vmatprep.subr.bf16.mxu0 %v1215
        %1592 = vmatpush1.bf16.msra.mxu0 %v1214
        %1593 = vmatprep.subr.bf16.mxu0 %v1213
        %1594 = vmatpush1.bf16.msra.mxu0 %v1212
        %1595 = vmatprep.subr.bf16.mxu0 %v1211
        %1596 = vmatpush1.bf16.msra.mxu0 %v1210
        %1597 = vmatprep.subr.bf16.mxu0 %v1209
        %1598 = vmatpush1.bf16.msra.mxu0 %v1208
        %1599 = vmatprep.subr.bf16.mxu0 %v1207
        %1600 = vmatpush1.bf16.msra.mxu0 %v1206
        %1601 = vmatprep.subr.bf16.mxu0 %v1205
        %1602 = vmatpush1.bf16.msra.mxu0 %v1204
        %1603 = vmatprep.subr.bf16.mxu0 %v1235
        %1604 = vmatpush2.bf16.msra.mxu0 %v1234
        %1605 = vmatprep.subr.bf16.mxu0 %v1233
        %1606 = vmatpush2.bf16.msra.mxu0 %v1232
        %1607 = vmatprep.subr.bf16.mxu0 %v1231
        %1608 = vmatpush2.bf16.msra.mxu0 %v1230
        %1609 = vmatprep.subr.bf16.mxu0 %v1229
        %1610 = vmatpush2.bf16.msra.mxu0 %v1228
        %1611 = vmatprep.subr.bf16.mxu0 %v1227
        %1612 = vmatpush2.bf16.msra.mxu0 %v1226
        %1613 = vmatprep.subr.bf16.mxu0 %v1225
        %1614 = vmatpush2.bf16.msra.mxu0 %v1224
        %1615 = vmatprep.subr.bf16.mxu0 %v1223
        %1616 = vmatpush2.bf16.msra.mxu0 %v1222
        %1617 = vmatprep.subr.bf16.mxu0 %v1221
        %1618 = vmatpush2.bf16.msra.mxu0 %v1220
        %1619 = vmatprep.mubr.bf16.mxu0 %v747
        %1620 = vmatmul.mubr.bf16.gmra.mxu0 %v746
        %v1621 = vpop.f32.mrf.mxu0
        %v1622 = vadd.f32 %v1509, %v1621
        %v1623 = vpop.f32.mrf.mxu0
        %v1624 = vadd.f32 %v1511, %v1623
        %v1625 = vpop.f32.mrf.mxu0
        %v1626 = vadd.f32 %v1513, %v1625
        %v1627 = vpop.f32.mrf.mxu0
        %v1628 = vadd.f32 %v1515, %v1627
        %1629 = vmatprep.mubr.bf16.mxu0 %v754
        %1630 = vmatmul.mubr.bf16.gmra.mxu0 %v753
        %v1631 = vpop.f32.mrf.mxu0
        %v1632 = vadd.f32 %v1519, %v1631
        %v1633 = vpop.f32.mrf.mxu0
        %v1634 = vadd.f32 %v1521, %v1633
        %v1635 = vpop.f32.mrf.mxu0
        %v1636 = vadd.f32 %v1523, %v1635
        %v1637 = vpop.f32.mrf.mxu0
        %v1638 = vadd.f32 %v1525, %v1637
        %1639 = vmatprep.mubr.bf16.mxu0 %v761
        %1640 = vmatmul.mubr.bf16.gmra.mxu0 %v760
        %v1641 = vpop.f32.mrf.mxu0
        %v1642 = vadd.f32 %v1529, %v1641
        %v1643 = vpop.f32.mrf.mxu0
        %v1644 = vadd.f32 %v1531, %v1643
        %v1645 = vpop.f32.mrf.mxu0
        %v1646 = vadd.f32 %v1533, %v1645
        %v1647 = vpop.f32.mrf.mxu0
        %v1648 = vadd.f32 %v1535, %v1647
        %1649 = vmatprep.mubr.bf16.mxu0 %v768
        %1650 = vmatmul.mubr.bf16.gmra.mxu0 %v767
        %v1651 = vpop.f32.mrf.mxu0
        %v1652 = vadd.f32 %v1539, %v1651
        %v1653 = vpop.f32.mrf.mxu0
        %v1654 = vadd.f32 %v1541, %v1653
        %v1655 = vpop.f32.mrf.mxu0
        %v1656 = vadd.f32 %v1543, %v1655
        %v1657 = vpop.f32.mrf.mxu0
        %v1658 = vadd.f32 %v1545, %v1657
        %1659 = vmatprep.mubr.bf16.mxu0 %v775
        %1660 = vmatmul.mubr.bf16.gmra.mxu0 %v774
        %v1661 = vpop.f32.mrf.mxu0
        %v1662 = vadd.f32 %v1549, %v1661
        %v1663 = vpop.f32.mrf.mxu0
        %v1664 = vadd.f32 %v1551, %v1663
        %v1665 = vpop.f32.mrf.mxu0
        %v1666 = vadd.f32 %v1553, %v1665
        %v1667 = vpop.f32.mrf.mxu0
        %v1668 = vadd.f32 %v1555, %v1667
        %1669 = vmatprep.mubr.bf16.mxu0 %v782
        %1670 = vmatmul.mubr.bf16.gmra.mxu0 %v781
        %v1671 = vpop.f32.mrf.mxu0
        %v1672 = vadd.f32 %v1559, %v1671
        %v1673 = vpop.f32.mrf.mxu0
        %v1674 = vadd.f32 %v1561, %v1673
        %v1675 = vpop.f32.mrf.mxu0
        %v1676 = vadd.f32 %v1563, %v1675
        %v1677 = vpop.f32.mrf.mxu0
        %v1678 = vadd.f32 %v1565, %v1677
        %1679 = vmatprep.mubr.bf16.mxu0 %v789
        %1680 = vmatmul.mubr.bf16.gmra.mxu0 %v788
        %v1681 = vpop.f32.mrf.mxu0
        %v1682 = vadd.f32 %v1569, %v1681
        %v1683 = vpop.f32.mrf.mxu0
        %v1684 = vadd.f32 %v1571, %v1683
        %v1685 = vpop.f32.mrf.mxu0
        %v1686 = vadd.f32 %v1573, %v1685
        %v1687 = vpop.f32.mrf.mxu0
        %v1688 = vadd.f32 %v1575, %v1687
        %1689 = vmatprep.mubr.bf16.mxu0 %v796
        %1690 = vmatmul.mubr.bf16.gmra.mxu0 %v795
        %v1691 = vpop.f32.mrf.mxu0
        %v1692 = vadd.f32 %v1579, %v1691
        %v1693 = vpop.f32.mrf.mxu0
        %v1694 = vadd.f32 %v1581, %v1693
        %v1695 = vpop.f32.mrf.mxu0
        %v1696 = vadd.f32 %v1583, %v1695
        %v1697 = vpop.f32.mrf.mxu0
        %v1698 = vadd.f32 %v1585, %v1697
        %1699 = vdwg.mxu0
        %1700 = vmatprep.subr.bf16.mxu0 0
        %1701 = vmatpush1.bf16.msra.mxu0 0
        %1702 = vmatprep.subr.bf16.mxu0 0
        %1703 = vmatpush1.bf16.msra.mxu0 0
        %1704 = vmatprep.subr.bf16.mxu0 0
        %1705 = vmatpush1.bf16.msra.mxu0 0
        %1706 = vmatprep.subr.bf16.mxu0 0
        %1707 = vmatpush1.bf16.msra.mxu0 0
        %1708 = vmatprep.subr.bf16.mxu0 0
        %1709 = vmatpush1.bf16.msra.mxu0 0
        %1710 = vmatprep.subr.bf16.mxu0 0
        %1711 = vmatpush1.bf16.msra.mxu0 0
        %1712 = vmatprep.subr.bf16.mxu0 0
        %1713 = vmatpush1.bf16.msra.mxu0 0
        %1714 = vmatprep.subr.bf16.mxu0 %v1237
        %1715 = vmatpush1.bf16.msra.mxu0 %v1236
        %1716 = vmatprep.subr.bf16.mxu0 0
        %1717 = vmatpush2.bf16.msra.mxu0 0
        %1718 = vmatprep.subr.bf16.mxu0 0
        %1719 = vmatpush2.bf16.msra.mxu0 0
        %1720 = vmatprep.subr.bf16.mxu0 0
        %1721 = vmatpush2.bf16.msra.mxu0 0
        %1722 = vmatprep.subr.bf16.mxu0 0
        %1723 = vmatpush2.bf16.msra.mxu0 0
        %1724 = vmatprep.subr.bf16.mxu0 0
        %1725 = vmatpush2.bf16.msra.mxu0 0
        %1726 = vmatprep.subr.bf16.mxu0 0
        %1727 = vmatpush2.bf16.msra.mxu0 0
        %1728 = vmatprep.subr.bf16.mxu0 0
        %1729 = vmatpush2.bf16.msra.mxu0 0
        %1730 = vmatprep.subr.bf16.mxu0 0
        %1731 = vmatpush2.bf16.msra.mxu0 0
        %1732 = vmatprep.mubr.bf16.mxu0 0
        %1733 = vmatmul.mubr.bf16.gmra.mxu0 %v1338
        %v1734 = vpop.f32.mrf.mxu0
        %v1735 = vadd.f32 %v1622, %v1734
        %v1736 = vpop.f32.mrf.mxu0
        %v1737 = vadd.f32 %v1624, %v1736
        %v1738 = vpop.f32.mrf.mxu0
        %v1739 = vadd.f32 %v1626, %v1738
        %v1740 = vpop.f32.mrf.mxu0
        %v1741 = vadd.f32 %v1628, %v1740
        %1742 = vmatprep.mubr.bf16.mxu0 0
        %1743 = vmatmul.mubr.bf16.gmra.mxu0 %v1341
        %v1744 = vpop.f32.mrf.mxu0
        %v1745 = vadd.f32 %v1632, %v1744
        %v1746 = vpop.f32.mrf.mxu0
        %v1747 = vadd.f32 %v1634, %v1746
        %v1748 = vpop.f32.mrf.mxu0
        %v1749 = vadd.f32 %v1636, %v1748
        %v1750 = vpop.f32.mrf.mxu0
        %v1751 = vadd.f32 %v1638, %v1750
        %1752 = vmatprep.mubr.bf16.mxu0 0
        %1753 = vmatmul.mubr.bf16.gmra.mxu0 %v1344
        %v1754 = vpop.f32.mrf.mxu0
        %v1755 = vadd.f32 %v1642, %v1754
        %v1756 = vpop.f32.mrf.mxu0
        %v1757 = vadd.f32 %v1644, %v1756
        %v1758 = vpop.f32.mrf.mxu0
        %v1759 = vadd.f32 %v1646, %v1758
        %v1760 = vpop.f32.mrf.mxu0
        %v1761 = vadd.f32 %v1648, %v1760
        %1762 = vmatprep.mubr.bf16.mxu0 0
        %1763 = vmatmul.mubr.bf16.gmra.mxu0 %v1347
        %v1764 = vpop.f32.mrf.mxu0
        %v1765 = vadd.f32 %v1652, %v1764
        %v1766 = vpop.f32.mrf.mxu0
        %v1767 = vadd.f32 %v1654, %v1766
        %v1768 = vpop.f32.mrf.mxu0
        %v1769 = vadd.f32 %v1656, %v1768
        %v1770 = vpop.f32.mrf.mxu0
        %v1771 = vadd.f32 %v1658, %v1770
        %1772 = vmatprep.mubr.bf16.mxu0 0
        %1773 = vmatmul.mubr.bf16.gmra.mxu0 %v1350
        %v1774 = vpop.f32.mrf.mxu0
        %v1775 = vadd.f32 %v1662, %v1774
        %v1776 = vpop.f32.mrf.mxu0
        %v1777 = vadd.f32 %v1664, %v1776
        %v1778 = vpop.f32.mrf.mxu0
        %v1779 = vadd.f32 %v1666, %v1778
        %v1780 = vpop.f32.mrf.mxu0
        %v1781 = vadd.f32 %v1668, %v1780
        %1782 = vmatprep.mubr.bf16.mxu0 0
        %1783 = vmatmul.mubr.bf16.gmra.mxu0 %v1353
        %v1784 = vpop.f32.mrf.mxu0
        %v1785 = vadd.f32 %v1672, %v1784
        %v1786 = vpop.f32.mrf.mxu0
        %v1787 = vadd.f32 %v1674, %v1786
        %v1788 = vpop.f32.mrf.mxu0
        %v1789 = vadd.f32 %v1676, %v1788
        %v1790 = vpop.f32.mrf.mxu0
        %v1791 = vadd.f32 %v1678, %v1790
        %1792 = vmatprep.mubr.bf16.mxu0 0
        %1793 = vmatmul.mubr.bf16.gmra.mxu0 %v1356
        %v1794 = vpop.f32.mrf.mxu0
        %v1795 = vadd.f32 %v1682, %v1794
        %v1796 = vpop.f32.mrf.mxu0
        %v1797 = vadd.f32 %v1684, %v1796
        %v1798 = vpop.f32.mrf.mxu0
        %v1799 = vadd.f32 %v1686, %v1798
        %v1800 = vpop.f32.mrf.mxu0
        %v1801 = vadd.f32 %v1688, %v1800
        %1802 = vmatprep.mubr.bf16.mxu0 0
        %1803 = vmatmul.mubr.bf16.gmra.mxu0 %v1359
        %v1804 = vpop.f32.mrf.mxu0
        %v1805 = vadd.f32 %v1692, %v1804
        %v1806 = vpop.f32.mrf.mxu0
        %v1807 = vadd.f32 %v1694, %v1806
        %v1808 = vpop.f32.mrf.mxu0
        %v1809 = vadd.f32 %v1696, %v1808
        %v1810 = vpop.f32.mrf.mxu0
        %v1811 = vadd.f32 %v1698, %v1810
        %1812 = vdwg.mxu0
        %v1813 = vlaneseq
        %v1814 = vand.u32 %v1813, 127
        %v1815 = vadd.s32 %v1814, 128
        %v1816 = vmul.u32 %v1814, 2246822507
        %v1817 = vmul.u32 %v1815, 2246822507
        %s1818 = smul.u32 %s340, 3266489909
        %v1819 = vstv %s1818
        %v1820 = vadd.s32 %v1816, %v1819
        %v1821 = vadd.s32 %v1817, %v1819
        %v1822 = vadd.s32 %v1820, 668265263
        %v1823 = vadd.s32 %v1821, 668265263
        %v1824 = vadd.s32 %v376, %v1822
        %v1825 = vadd.s32 %v376, %v1823
        %v1826 = vadd.s32 %v377, %v1822
        %v1827 = vadd.s32 %v377, %v1823
        %v1828 = vadd.s32 %v378, %v1822
        %v1829 = vadd.s32 %v378, %v1823
        %v1830 = vadd.s32 %v379, %v1822
        %v1831 = vadd.s32 %v379, %v1823
        %v1832 = vadd.s32 %v380, %v1822
        %v1833 = vadd.s32 %v380, %v1823
        %v1834 = vadd.s32 %v381, %v1822
        %v1835 = vadd.s32 %v381, %v1823
        %v1836 = vadd.s32 %v382, %v1822
        %v1837 = vadd.s32 %v382, %v1823
        %v1838 = vadd.s32 %v383, %v1822
        %v1839 = vadd.s32 %v383, %v1823
        %v1840 = vadd.s32 %v384, %v1822
        %v1841 = vadd.s32 %v384, %v1823
        %v1842 = vadd.s32 %v385, %v1822
        %v1843 = vadd.s32 %v385, %v1823
        %v1844 = vadd.s32 %v386, %v1822
        %v1845 = vadd.s32 %v386, %v1823
        %v1846 = vadd.s32 %v387, %v1822
        %v1847 = vadd.s32 %v387, %v1823
        %v1848 = vadd.s32 %v388, %v1822
        %v1849 = vadd.s32 %v388, %v1823
        %v1850 = vadd.s32 %v389, %v1822
        %v1851 = vadd.s32 %v389, %v1823
        %v1852 = vadd.s32 %v390, %v1822
        %v1853 = vadd.s32 %v390, %v1823
        %v1854 = vadd.s32 %v391, %v1822
        %v1855 = vadd.s32 %v391, %v1823
        %v1856 = vshrl.u32 %v1824, 16
        %v1857 = vshrl.u32 %v1825, 16
        %v1858 = vshrl.u32 %v1826, 16
        %v1859 = vshrl.u32 %v1827, 16
        %v1860 = vshrl.u32 %v1828, 16
        %v1861 = vshrl.u32 %v1829, 16
        %v1862 = vshrl.u32 %v1830, 16
        %v1863 = vshrl.u32 %v1831, 16
        %v1864 = vshrl.u32 %v1832, 16
        %v1865 = vshrl.u32 %v1833, 16
        %v1866 = vshrl.u32 %v1834, 16
        %v1867 = vshrl.u32 %v1835, 16
        %v1868 = vshrl.u32 %v1836, 16
        %v1869 = vshrl.u32 %v1837, 16
        %v1870 = vshrl.u32 %v1838, 16
        %v1871 = vshrl.u32 %v1839, 16
        %v1872 = vshrl.u32 %v1840, 16
        %v1873 = vshrl.u32 %v1841, 16
        %v1874 = vshrl.u32 %v1842, 16
        %v1875 = vshrl.u32 %v1843, 16
        %v1876 = vshrl.u32 %v1844, 16
        %v1877 = vshrl.u32 %v1845, 16
        %v1878 = vshrl.u32 %v1846, 16
        %v1879 = vshrl.u32 %v1847, 16
        %v1880 = vshrl.u32 %v1848, 16
        %v1881 = vshrl.u32 %v1849, 16
        %v1882 = vshrl.u32 %v1850, 16
        %v1883 = vshrl.u32 %v1851, 16
        %v1884 = vshrl.u32 %v1852, 16
        %v1885 = vshrl.u32 %v1853, 16
        %v1886 = vshrl.u32 %v1854, 16
        %v1887 = vshrl.u32 %v1855, 16
        %v1888 = vxor.u32 %v1824, %v1856
        %v1889 = vxor.u32 %v1825, %v1857
        %v1890 = vxor.u32 %v1826, %v1858
        %v1891 = vxor.u32 %v1827, %v1859
        %v1892 = vxor.u32 %v1828, %v1860
        %v1893 = vxor.u32 %v1829, %v1861
        %v1894 = vxor.u32 %v1830, %v1862
        %v1895 = vxor.u32 %v1831, %v1863
        %v1896 = vxor.u32 %v1832, %v1864
        %v1897 = vxor.u32 %v1833, %v1865
        %v1898 = vxor.u32 %v1834, %v1866
        %v1899 = vxor.u32 %v1835, %v1867
        %v1900 = vxor.u32 %v1836, %v1868
        %v1901 = vxor.u32 %v1837, %v1869
        %v1902 = vxor.u32 %v1838, %v1870
        %v1903 = vxor.u32 %v1839, %v1871
        %v1904 = vxor.u32 %v1840, %v1872
        %v1905 = vxor.u32 %v1841, %v1873
        %v1906 = vxor.u32 %v1842, %v1874
        %v1907 = vxor.u32 %v1843, %v1875
        %v1908 = vxor.u32 %v1844, %v1876
        %v1909 = vxor.u32 %v1845, %v1877
        %v1910 = vxor.u32 %v1846, %v1878
        %v1911 = vxor.u32 %v1847, %v1879
        %v1912 = vxor.u32 %v1848, %v1880
        %v1913 = vxor.u32 %v1849, %v1881
        %v1914 = vxor.u32 %v1850, %v1882
        %v1915 = vxor.u32 %v1851, %v1883
        %v1916 = vxor.u32 %v1852, %v1884
        %v1917 = vxor.u32 %v1853, %v1885
        %v1918 = vxor.u32 %v1854, %v1886
        %v1919 = vxor.u32 %v1855, %v1887
        %v1920 = vmul.u32 %v1888, 2146121005
        %v1921 = vmul.u32 %v1889, 2146121005
        %v1922 = vmul.u32 %v1890, 2146121005
        %v1923 = vmul.u32 %v1891, 2146121005
        %v1924 = vmul.u32 %v1892, 2146121005
        %v1925 = vmul.u32 %v1893, 2146121005
        %v1926 = vmul.u32 %v1894, 2146121005
        %v1927 = vmul.u32 %v1895, 2146121005
        %v1928 = vmul.u32 %v1896, 2146121005
        %v1929 = vmul.u32 %v1897, 2146121005
        %v1930 = vmul.u32 %v1898, 2146121005
        %v1931 = vmul.u32 %v1899, 2146121005
        %v1932 = vmul.u32 %v1900, 2146121005
        %v1933 = vmul.u32 %v1901, 2146121005
        %v1934 = vmul.u32 %v1902, 2146121005
        %v1935 = vmul.u32 %v1903, 2146121005
        %v1936 = vmul.u32 %v1904, 2146121005
        %v1937 = vmul.u32 %v1905, 2146121005
        %v1938 = vmul.u32 %v1906, 2146121005
        %v1939 = vmul.u32 %v1907, 2146121005
        %v1940 = vmul.u32 %v1908, 2146121005
        %v1941 = vmul.u32 %v1909, 2146121005
        %v1942 = vmul.u32 %v1910, 2146121005
        %v1943 = vmul.u32 %v1911, 2146121005
        %v1944 = vmul.u32 %v1912, 2146121005
        %v1945 = vmul.u32 %v1913, 2146121005
        %v1946 = vmul.u32 %v1914, 2146121005
        %v1947 = vmul.u32 %v1915, 2146121005
        %v1948 = vmul.u32 %v1916, 2146121005
        %v1949 = vmul.u32 %v1917, 2146121005
        %v1950 = vmul.u32 %v1918, 2146121005
        %v1951 = vmul.u32 %v1919, 2146121005
        %v1952 = vshrl.u32 %v1920, 15
        %v1953 = vshrl.u32 %v1921, 15
        %v1954 = vshrl.u32 %v1922, 15
        %v1955 = vshrl.u32 %v1923, 15
        %v1956 = vshrl.u32 %v1924, 15
        %v1957 = vshrl.u32 %v1925, 15
        %v1958 = vshrl.u32 %v1926, 15
        %v1959 = vshrl.u32 %v1927, 15
        %v1960 = vshrl.u32 %v1928, 15
        %v1961 = vshrl.u32 %v1929, 15
        %v1962 = vshrl.u32 %v1930, 15
        %v1963 = vshrl.u32 %v1931, 15
        %v1964 = vshrl.u32 %v1932, 15
        %v1965 = vshrl.u32 %v1933, 15
        %v1966 = vshrl.u32 %v1934, 15
        %v1967 = vshrl.u32 %v1935, 15
        %v1968 = vshrl.u32 %v1936, 15
        %v1969 = vshrl.u32 %v1937, 15
        %v1970 = vshrl.u32 %v1938, 15
        %v1971 = vshrl.u32 %v1939, 15
        %v1972 = vshrl.u32 %v1940, 15
        %v1973 = vshrl.u32 %v1941, 15
        %v1974 = vshrl.u32 %v1942, 15
        %v1975 = vshrl.u32 %v1943, 15
        %v1976 = vshrl.u32 %v1944, 15
        %v1977 = vshrl.u32 %v1945, 15
        %v1978 = vshrl.u32 %v1946, 15
        %v1979 = vshrl.u32 %v1947, 15
        %v1980 = vshrl.u32 %v1948, 15
        %v1981 = vshrl.u32 %v1949, 15
        %v1982 = vshrl.u32 %v1950, 15
        %v1983 = vshrl.u32 %v1951, 15
        %v1984 = vxor.u32 %v1920, %v1952
        %v1985 = vxor.u32 %v1921, %v1953
        %v1986 = vxor.u32 %v1922, %v1954
        %v1987 = vxor.u32 %v1923, %v1955
        %v1988 = vxor.u32 %v1924, %v1956
        %v1989 = vxor.u32 %v1925, %v1957
        %v1990 = vxor.u32 %v1926, %v1958
        %v1991 = vxor.u32 %v1927, %v1959
        %v1992 = vxor.u32 %v1928, %v1960
        %v1993 = vxor.u32 %v1929, %v1961
        %v1994 = vxor.u32 %v1930, %v1962
        %v1995 = vxor.u32 %v1931, %v1963
        %v1996 = vxor.u32 %v1932, %v1964
        %v1997 = vxor.u32 %v1933, %v1965
        %v1998 = vxor.u32 %v1934, %v1966
        %v1999 = vxor.u32 %v1935, %v1967
        %v2000 = vxor.u32 %v1936, %v1968
        %v2001 = vxor.u32 %v1937, %v1969
        %v2002 = vxor.u32 %v1938, %v1970
        %v2003 = vxor.u32 %v1939, %v1971
        %v2004 = vxor.u32 %v1940, %v1972
        %v2005 = vxor.u32 %v1941, %v1973
        %v2006 = vxor.u32 %v1942, %v1974
        %v2007 = vxor.u32 %v1943, %v1975
        %v2008 = vxor.u32 %v1944, %v1976
        %v2009 = vxor.u32 %v1945, %v1977
        %v2010 = vxor.u32 %v1946, %v1978
        %v2011 = vxor.u32 %v1947, %v1979
        %v2012 = vxor.u32 %v1948, %v1980
        %v2013 = vxor.u32 %v1949, %v1981
        %v2014 = vxor.u32 %v1950, %v1982
        %v2015 = vxor.u32 %v1951, %v1983
        %v2016 = vmul.u32 %v1984, 2221713035
        %v2017 = vmul.u32 %v1985, 2221713035
        %v2018 = vmul.u32 %v1986, 2221713035
        %v2019 = vmul.u32 %v1987, 2221713035
        %v2020 = vmul.u32 %v1988, 2221713035
        %v2021 = vmul.u32 %v1989, 2221713035
        %v2022 = vmul.u32 %v1990, 2221713035
        %v2023 = vmul.u32 %v1991, 2221713035
        %v2024 = vmul.u32 %v1992, 2221713035
        %v2025 = vmul.u32 %v1993, 2221713035
        %v2026 = vmul.u32 %v1994, 2221713035
        %v2027 = vmul.u32 %v1995, 2221713035
        %v2028 = vmul.u32 %v1996, 2221713035
        %v2029 = vmul.u32 %v1997, 2221713035
        %v2030 = vmul.u32 %v1998, 2221713035
        %v2031 = vmul.u32 %v1999, 2221713035
        %v2032 = vmul.u32 %v2000, 2221713035
        %v2033 = vmul.u32 %v2001, 2221713035
        %v2034 = vmul.u32 %v2002, 2221713035
        %v2035 = vmul.u32 %v2003, 2221713035
        %v2036 = vmul.u32 %v2004, 2221713035
        %v2037 = vmul.u32 %v2005, 2221713035
        %v2038 = vmul.u32 %v2006, 2221713035
        %v2039 = vmul.u32 %v2007, 2221713035
        %v2040 = vmul.u32 %v2008, 2221713035
        %v2041 = vmul.u32 %v2009, 2221713035
        %v2042 = vmul.u32 %v2010, 2221713035
        %v2043 = vmul.u32 %v2011, 2221713035
        %v2044 = vmul.u32 %v2012, 2221713035
        %v2045 = vmul.u32 %v2013, 2221713035
        %v2046 = vmul.u32 %v2014, 2221713035
        %v2047 = vmul.u32 %v2015, 2221713035
        %vm2048 = vcmp.ge.s32.totalorder %v2016, 0
        %vm2049 = vcmp.ge.s32.totalorder %v2017, 0
        %vm2050 = vcmp.ge.s32.totalorder %v2018, 0
        %vm2051 = vcmp.ge.s32.totalorder %v2019, 0
        %vm2052 = vcmp.ge.s32.totalorder %v2020, 0
        %vm2053 = vcmp.ge.s32.totalorder %v2021, 0
        %vm2054 = vcmp.ge.s32.totalorder %v2022, 0
        %vm2055 = vcmp.ge.s32.totalorder %v2023, 0
        %vm2056 = vcmp.ge.s32.totalorder %v2024, 0
        %vm2057 = vcmp.ge.s32.totalorder %v2025, 0
        %vm2058 = vcmp.ge.s32.totalorder %v2026, 0
        %vm2059 = vcmp.ge.s32.totalorder %v2027, 0
        %vm2060 = vcmp.ge.s32.totalorder %v2028, 0
        %vm2061 = vcmp.ge.s32.totalorder %v2029, 0
        %vm2062 = vcmp.ge.s32.totalorder %v2030, 0
        %vm2063 = vcmp.ge.s32.totalorder %v2031, 0
        %vm2064 = vcmp.ge.s32.totalorder %v2032, 0
        %vm2065 = vcmp.ge.s32.totalorder %v2033, 0
        %vm2066 = vcmp.ge.s32.totalorder %v2034, 0
        %vm2067 = vcmp.ge.s32.totalorder %v2035, 0
        %vm2068 = vcmp.ge.s32.totalorder %v2036, 0
        %vm2069 = vcmp.ge.s32.totalorder %v2037, 0
        %vm2070 = vcmp.ge.s32.totalorder %v2038, 0
        %vm2071 = vcmp.ge.s32.totalorder %v2039, 0
        %vm2072 = vcmp.ge.s32.totalorder %v2040, 0
        %vm2073 = vcmp.ge.s32.totalorder %v2041, 0
        %vm2074 = vcmp.ge.s32.totalorder %v2042, 0
        %vm2075 = vcmp.ge.s32.totalorder %v2043, 0
        %vm2076 = vcmp.ge.s32.totalorder %v2044, 0
        %vm2077 = vcmp.ge.s32.totalorder %v2045, 0
        %vm2078 = vcmp.ge.s32.totalorder %v2046, 0
        %vm2079 = vcmp.ge.s32.totalorder %v2047, 0
        %vm2080 = vcmp.gt.f32.partialorder %v1735, 0.0
        %vm2081 = vcmp.gt.f32.partialorder %v1737, 0.0
        %vm2082 = vcmp.gt.f32.partialorder %v1739, 0.0
        %vm2083 = vcmp.gt.f32.partialorder %v1741, 0.0
        %vm2084 = vcmp.gt.f32.partialorder %v1745, 0.0
        %vm2085 = vcmp.gt.f32.partialorder %v1747, 0.0
        %vm2086 = vcmp.gt.f32.partialorder %v1749, 0.0
        %vm2087 = vcmp.gt.f32.partialorder %v1751, 0.0
        %vm2088 = vcmp.gt.f32.partialorder %v1755, 0.0
        %vm2089 = vcmp.gt.f32.partialorder %v1757, 0.0
        %vm2090 = vcmp.gt.f32.partialorder %v1759, 0.0
        %vm2091 = vcmp.gt.f32.partialorder %v1761, 0.0
        %vm2092 = vcmp.gt.f32.partialorder %v1765, 0.0
        %vm2093 = vcmp.gt.f32.partialorder %v1767, 0.0
        %vm2094 = vcmp.gt.f32.partialorder %v1769, 0.0
        %vm2095 = vcmp.gt.f32.partialorder %v1771, 0.0
        %vm2096 = vcmp.gt.f32.partialorder %v1775, 0.0
        %vm2097 = vcmp.gt.f32.partialorder %v1777, 0.0
        %vm2098 = vcmp.gt.f32.partialorder %v1779, 0.0
        %vm2099 = vcmp.gt.f32.partialorder %v1781, 0.0
        %vm2100 = vcmp.gt.f32.partialorder %v1785, 0.0
        %vm2101 = vcmp.gt.f32.partialorder %v1787, 0.0
        %vm2102 = vcmp.gt.f32.partialorder %v1789, 0.0
        %vm2103 = vcmp.gt.f32.partialorder %v1791, 0.0
        %vm2104 = vcmp.gt.f32.partialorder %v1795, 0.0
        %vm2105 = vcmp.gt.f32.partialorder %v1797, 0.0
        %vm2106 = vcmp.gt.f32.partialorder %v1799, 0.0
        %vm2107 = vcmp.gt.f32.partialorder %v1801, 0.0
        %vm2108 = vcmp.gt.f32.partialorder %v1805, 0.0
        %vm2109 = vcmp.gt.f32.partialorder %v1807, 0.0
        %vm2110 = vcmp.gt.f32.partialorder %v1809, 0.0
        %vm2111 = vcmp.gt.f32.partialorder %v1811, 0.0
        %vm2112 = vmand %vm2080, %vm2048
        %vm2113 = vmand %vm2081, %vm2049
        %vm2114 = vmand %vm2082, %vm2050
        %vm2115 = vmand %vm2083, %vm2051
        %vm2116 = vmand %vm2084, %vm2052
        %vm2117 = vmand %vm2085, %vm2053
        %vm2118 = vmand %vm2086, %vm2054
        %vm2119 = vmand %vm2087, %vm2055
        %vm2120 = vmand %vm2088, %vm2056
        %vm2121 = vmand %vm2089, %vm2057
        %vm2122 = vmand %vm2090, %vm2058
        %vm2123 = vmand %vm2091, %vm2059
        %vm2124 = vmand %vm2092, %vm2060
        %vm2125 = vmand %vm2093, %vm2061
        %vm2126 = vmand %vm2094, %vm2062
        %vm2127 = vmand %vm2095, %vm2063
        %vm2128 = vmand %vm2096, %vm2064
        %vm2129 = vmand %vm2097, %vm2065
        %vm2130 = vmand %vm2098, %vm2066
        %vm2131 = vmand %vm2099, %vm2067
        %vm2132 = vmand %vm2100, %vm2068
        %vm2133 = vmand %vm2101, %vm2069
        %vm2134 = vmand %vm2102, %vm2070
        %vm2135 = vmand %vm2103, %vm2071
        %vm2136 = vmand %vm2104, %vm2072
        %vm2137 = vmand %vm2105, %vm2073
        %vm2138 = vmand %vm2106, %vm2074
        %vm2139 = vmand %vm2107, %vm2075
        %vm2140 = vmand %vm2108, %vm2076
        %vm2141 = vmand %vm2109, %vm2077
        %vm2142 = vmand %vm2110, %vm2078
        %vm2143 = vmand %vm2111, %vm2079
        %v2144 = vsel %vm2112, %v1735, 0.0
        %v2145 = vsel %vm2113, %v1737, 0.0
        %v2146 = vsel %vm2114, %v1739, 0.0
        %v2147 = vsel %vm2115, %v1741, 0.0
        %v2148 = vsel %vm2116, %v1745, 0.0
        %v2149 = vsel %vm2117, %v1747, 0.0
        %v2150 = vsel %vm2118, %v1749, 0.0
        %v2151 = vsel %vm2119, %v1751, 0.0
        %v2152 = vsel %vm2120, %v1755, 0.0
        %v2153 = vsel %vm2121, %v1757, 0.0
        %v2154 = vsel %vm2122, %v1759, 0.0
        %v2155 = vsel %vm2123, %v1761, 0.0
        %v2156 = vsel %vm2124, %v1765, 0.0
        %v2157 = vsel %vm2125, %v1767, 0.0
        %v2158 = vsel %vm2126, %v1769, 0.0
        %v2159 = vsel %vm2127, %v1771, 0.0
        %v2160 = vsel %vm2128, %v1775, 0.0
        %v2161 = vsel %vm2129, %v1777, 0.0
        %v2162 = vsel %vm2130, %v1779, 0.0
        %v2163 = vsel %vm2131, %v1781, 0.0
        %v2164 = vsel %vm2132, %v1785, 0.0
        %v2165 = vsel %vm2133, %v1787, 0.0
        %v2166 = vsel %vm2134, %v1789, 0.0
        %v2167 = vsel %vm2135, %v1791, 0.0
        %v2168 = vsel %vm2136, %v1795, 0.0
        %v2169 = vsel %vm2137, %v1797, 0.0
        %v2170 = vsel %vm2138, %v1799, 0.0
        %v2171 = vsel %vm2139, %v1801, 0.0
        %v2172 = vsel %vm2140, %v1805, 0.0
        %v2173 = vsel %vm2141, %v1807, 0.0
        %v2174 = vsel %vm2142, %v1809, 0.0
        %v2175 = vsel %vm2143, %v1811, 0.0
        %v2176 = vpack.c.bf16 %v2146, %v2144
        %v2177 = vpack.c.bf16 %v2147, %v2145
        %v2178 = vpack.c.bf16 %v2150, %v2148
        %v2179 = vpack.c.bf16 %v2151, %v2149
        %v2180 = vpack.c.bf16 %v2154, %v2152
        %v2181 = vpack.c.bf16 %v2155, %v2153
        %v2182 = vpack.c.bf16 %v2158, %v2156
        %v2183 = vpack.c.bf16 %v2159, %v2157
        %v2184 = vpack.c.bf16 %v2162, %v2160
        %v2185 = vpack.c.bf16 %v2163, %v2161
        %v2186 = vpack.c.bf16 %v2166, %v2164
        %v2187 = vpack.c.bf16 %v2167, %v2165
        %v2188 = vpack.c.bf16 %v2170, %v2168
        %v2189 = vpack.c.bf16 %v2171, %v2169
        %v2190 = vpack.c.bf16 %v2174, %v2172
        %v2191 = vpack.c.bf16 %v2175, %v2173
        %v2192 = vld [vmem:[%s4] sm:$0xf]
        %v2193 = vld [vmem:[%s4 + $0x4] sm:$0xf]
        %v2194 = vld [vmem:[%s4 + $0x8] sm:$0xf]
        %v2195 = vld [vmem:[%s4 + $0xc] sm:$0xf]
        %v2196 = vld [vmem:[%s4 + $0x10] sm:$0xf]
        %v2197 = vld [vmem:[%s4 + $0x14] sm:$0xf]
        %v2198 = vld [vmem:[%s4 + $0x18] sm:$0xf]
        %v2199 = vld [vmem:[%s4 + $0x1c] sm:$0xf]
        %v2200 = vld [vmem:[%s4 + $0x20] sm:$0xf]
        %v2201 = vld [vmem:[%s4 + $0x24] sm:$0xf]
        %v2202 = vld [vmem:[%s4 + $0x28] sm:$0xf]
        %v2203 = vld [vmem:[%s4 + $0x2c] sm:$0xf]
        %v2204 = vld [vmem:[%s4 + $0x30] sm:$0xf]
        %v2205 = vld [vmem:[%s4 + $0x34] sm:$0xf]
        %v2206 = vld [vmem:[%s4 + $0x38] sm:$0xf]
        %v2207 = vld [vmem:[%s4 + $0x3c] sm:$0xf]
        %v2208 = vld [vmem:[%s4 + $0x40] sm:$0xf]
        %v2209 = vld [vmem:[%s4 + $0x44] sm:$0xf]
        %v2210 = vld [vmem:[%s4 + $0x48] sm:$0xf]
        %v2211 = vld [vmem:[%s4 + $0x4c] sm:$0xf]
        %v2212 = vld [vmem:[%s4 + $0x50] sm:$0xf]
        %v2213 = vld [vmem:[%s4 + $0x54] sm:$0xf]
        %v2214 = vld [vmem:[%s4 + $0x58] sm:$0xf]
        %v2215 = vld [vmem:[%s4 + $0x5c] sm:$0xf]
        %v2216 = vld [vmem:[%s4 + $0x60] sm:$0xf]
        %v2217 = vld [vmem:[%s4 + $0x64] sm:$0xf]
        %v2218 = vld [vmem:[%s4 + $0x68] sm:$0xf]
        %v2219 = vld [vmem:[%s4 + $0x6c] sm:$0xf]
        %v2220 = vld [vmem:[%s4 + $0x70] sm:$0xf]
        %v2221 = vld [vmem:[%s4 + $0x74] sm:$0xf]
        %v2222 = vld [vmem:[%s4 + $0x78] sm:$0xf]
        %v2223 = vld [vmem:[%s4 + $0x7c] sm:$0xf]
        %v2224 = vld [vmem:[%s5] sm:$0x1]
        %v2226 = vlaneseq
        %v2227 = vshrl.u32 %v2226, 7
        %v2228 = vsub.s32 0, %v2227
        %v2229 = vrot.slane %v2224, %v2228
        %v2263 = vunpack.c.l.b16 %v2192
        %v2264 = vunpack.c.l.b16 %v2193
        %v2265 = vunpack.c.l.b16 %v2194
        %v2266 = vunpack.c.l.b16 %v2195
        %v2267 = vunpack.c.l.b16 %v2196
        %v2268 = vunpack.c.l.b16 %v2197
        %v2269 = vunpack.c.l.b16 %v2198
        %v2270 = vunpack.c.l.b16 %v2199
        %v2271 = vunpack.c.l.b16 %v2200
        %v2272 = vunpack.c.l.b16 %v2201
        %v2273 = vunpack.c.l.b16 %v2202
        %v2274 = vunpack.c.l.b16 %v2203
        %v2275 = vunpack.c.l.b16 %v2204
        %v2276 = vunpack.c.l.b16 %v2205
        %v2277 = vunpack.c.l.b16 %v2206
        %v2278 = vunpack.c.l.b16 %v2207
        %v2279 = vunpack.c.l.b16 %v2208
        %v2280 = vunpack.c.l.b16 %v2209
        %v2281 = vunpack.c.l.b16 %v2210
        %v2282 = vunpack.c.l.b16 %v2211
        %v2283 = vunpack.c.l.b16 %v2212
        %v2284 = vunpack.c.l.b16 %v2213
        %v2285 = vunpack.c.l.b16 %v2214
        %v2286 = vunpack.c.l.b16 %v2215
        %v2287 = vunpack.c.l.b16 %v2216
        %v2288 = vunpack.c.l.b16 %v2217
        %v2289 = vunpack.c.l.b16 %v2218
        %v2290 = vunpack.c.l.b16 %v2219
        %v2291 = vunpack.c.l.b16 %v2220
        %v2292 = vunpack.c.l.b16 %v2221
        %v2293 = vunpack.c.l.b16 %v2222
        %v2294 = vunpack.c.l.b16 %v2223
        %v2295 = vpack.c.b16 %v2264, %v2263
        %v2296 = vpack.c.b16 %v2266, %v2265
        %v2297 = vpack.c.b16 %v2268, %v2267
        %v2298 = vpack.c.b16 %v2270, %v2269
        %v2299 = vpack.c.b16 %v2272, %v2271
        %v2300 = vpack.c.b16 %v2274, %v2273
        %v2301 = vpack.c.b16 %v2276, %v2275
        %v2302 = vpack.c.b16 %v2278, %v2277
        %v2303 = vpack.c.b16 %v2280, %v2279
        %v2304 = vpack.c.b16 %v2282, %v2281
        %v2305 = vpack.c.b16 %v2284, %v2283
        %v2306 = vpack.c.b16 %v2286, %v2285
        %v2307 = vpack.c.b16 %v2288, %v2287
        %v2308 = vpack.c.b16 %v2290, %v2289
        %v2309 = vpack.c.b16 %v2292, %v2291
        %v2310 = vpack.c.b16 %v2294, %v2293
        %2327 = vmatprep.subr.bf16.mxu0 0
        %2328 = vmatpush1.bf16.msra.mxu0 %v2302
        %2329 = vmatprep.subr.bf16.mxu0 0
        %2330 = vmatpush1.bf16.msra.mxu0 %v2301
        %2331 = vmatprep.subr.bf16.mxu0 0
        %2332 = vmatpush1.bf16.msra.mxu0 %v2300
        %2333 = vmatprep.subr.bf16.mxu0 0
        %2334 = vmatpush1.bf16.msra.mxu0 %v2299
        %2335 = vmatprep.subr.bf16.mxu0 0
        %2336 = vmatpush1.bf16.msra.mxu0 %v2298
        %2337 = vmatprep.subr.bf16.mxu0 0
        %2338 = vmatpush1.bf16.msra.mxu0 %v2297
        %2339 = vmatprep.subr.bf16.mxu0 0
        %2340 = vmatpush1.bf16.msra.mxu0 %v2296
        %2341 = vmatprep.subr.bf16.mxu0 0
        %2342 = vmatpush1.bf16.msra.mxu0 %v2295
        %2343 = vmatprep.subr.bf16.mxu0 0
        %2344 = vmatpush2.bf16.msra.mxu0 %v2310
        %2345 = vmatprep.subr.bf16.mxu0 0
        %2346 = vmatpush2.bf16.msra.mxu0 %v2309
        %2347 = vmatprep.subr.bf16.mxu0 0
        %2348 = vmatpush2.bf16.msra.mxu0 %v2308
        %2349 = vmatprep.subr.bf16.mxu0 0
        %2350 = vmatpush2.bf16.msra.mxu0 %v2307
        %2351 = vmatprep.subr.bf16.mxu0 0
        %2352 = vmatpush2.bf16.msra.mxu0 %v2306
        %2353 = vmatprep.subr.bf16.mxu0 0
        %2354 = vmatpush2.bf16.msra.mxu0 %v2305
        %2355 = vmatprep.subr.bf16.mxu0 0
        %2356 = vmatpush2.bf16.msra.mxu0 %v2304
        %2357 = vmatprep.subr.bf16.mxu0 0
        %2358 = vmatpush2.bf16.msra.mxu0 %v2303
        %2359 = vmatprep.mubr.bf16.mxu0 %v2177
        %2360 = vmatmul.mubr.bf16.gmra.mxu0 %v2176
        %v2361 = vpop.f32.mrf.mxu0
        %v2362 = vadd.f32 %v2229, %v2361
        %v2363 = vpop.f32.mrf.mxu0
        %v2364 = vpop.f32.mrf.mxu0
        %v2365 = vadd.f32 %v2229, %v2364
        %v2366 = vpop.f32.mrf.mxu0
        %2367 = vmatprep.mubr.bf16.mxu0 %v2179
        %2368 = vmatmul.mubr.bf16.gmra.mxu0 %v2178
        %v2369 = vpop.f32.mrf.mxu0
        %v2370 = vadd.f32 %v2229, %v2369
        %v2371 = vpop.f32.mrf.mxu0
        %v2372 = vpop.f32.mrf.mxu0
        %v2373 = vadd.f32 %v2229, %v2372
        %v2374 = vpop.f32.mrf.mxu0
        %2375 = vmatprep.mubr.bf16.mxu0 %v2181
        %2376 = vmatmul.mubr.bf16.gmra.mxu0 %v2180
        %v2377 = vpop.f32.mrf.mxu0
        %v2378 = vadd.f32 %v2229, %v2377
        %v2379 = vpop.f32.mrf.mxu0
        %v2380 = vpop.f32.mrf.mxu0
        %v2381 = vadd.f32 %v2229, %v2380
        %v2382 = vpop.f32.mrf.mxu0
        %2383 = vmatprep.mubr.bf16.mxu0 %v2183
        %2384 = vmatmul.mubr.bf16.gmra.mxu0 %v2182
        %v2385 = vpop.f32.mrf.mxu0
        %v2386 = vadd.f32 %v2229, %v2385
        %v2387 = vpop.f32.mrf.mxu0
        %v2388 = vpop.f32.mrf.mxu0
        %v2389 = vadd.f32 %v2229, %v2388
        %v2390 = vpop.f32.mrf.mxu0
        %2391 = vmatprep.mubr.bf16.mxu0 %v2185
        %2392 = vmatmul.mubr.bf16.gmra.mxu0 %v2184
        %v2393 = vpop.f32.mrf.mxu0
        %v2394 = vadd.f32 %v2229, %v2393
        %v2395 = vpop.f32.mrf.mxu0
        %v2396 = vpop.f32.mrf.mxu0
        %v2397 = vadd.f32 %v2229, %v2396
        %v2398 = vpop.f32.mrf.mxu0
        %2399 = vmatprep.mubr.bf16.mxu0 %v2187
        %2400 = vmatmul.mubr.bf16.gmra.mxu0 %v2186
        %v2401 = vpop.f32.mrf.mxu0
        %v2402 = vadd.f32 %v2229, %v2401
        %v2403 = vpop.f32.mrf.mxu0
        %v2404 = vpop.f32.mrf.mxu0
        %v2405 = vadd.f32 %v2229, %v2404
        %v2406 = vpop.f32.mrf.mxu0
        %2407 = vmatprep.mubr.bf16.mxu0 %v2189
        %2408 = vmatmul.mubr.bf16.gmra.mxu0 %v2188
        %v2409 = vpop.f32.mrf.mxu0
        %v2410 = vadd.f32 %v2229, %v2409
        %v2411 = vpop.f32.mrf.mxu0
        %v2412 = vpop.f32.mrf.mxu0
        %v2413 = vadd.f32 %v2229, %v2412
        %v2414 = vpop.f32.mrf.mxu0
        %2415 = vmatprep.mubr.bf16.mxu0 %v2191
        %2416 = vmatmul.mubr.bf16.gmra.mxu0 %v2190
        %v2417 = vpop.f32.mrf.mxu0
        %v2418 = vadd.f32 %v2229, %v2417
        %v2419 = vpop.f32.mrf.mxu0
        %v2420 = vpop.f32.mrf.mxu0
        %v2421 = vadd.f32 %v2229, %v2420
        %v2422 = vpop.f32.mrf.mxu0
        %2423 = vdwg.mxu0
        %v2424 = vadd.s32 %v1820, 1336530526
        %v2425 = vadd.s32 %v376, %v2424
        %v2426 = vadd.s32 %v377, %v2424
        %v2427 = vadd.s32 %v378, %v2424
        %v2428 = vadd.s32 %v379, %v2424
        %v2429 = vadd.s32 %v380, %v2424
        %v2430 = vadd.s32 %v381, %v2424
        %v2431 = vadd.s32 %v382, %v2424
        %v2432 = vadd.s32 %v383, %v2424
        %v2433 = vadd.s32 %v384, %v2424
        %v2434 = vadd.s32 %v385, %v2424
        %v2435 = vadd.s32 %v386, %v2424
        %v2436 = vadd.s32 %v387, %v2424
        %v2437 = vadd.s32 %v388, %v2424
        %v2438 = vadd.s32 %v389, %v2424
        %v2439 = vadd.s32 %v390, %v2424
        %v2440 = vadd.s32 %v391, %v2424
        %v2441 = vshrl.u32 %v2425, 16
        %v2442 = vshrl.u32 %v2426, 16
        %v2443 = vshrl.u32 %v2427, 16
        %v2444 = vshrl.u32 %v2428, 16
        %v2445 = vshrl.u32 %v2429, 16
        %v2446 = vshrl.u32 %v2430, 16
        %v2447 = vshrl.u32 %v2431, 16
        %v2448 = vshrl.u32 %v2432, 16
        %v2449 = vshrl.u32 %v2433, 16
        %v2450 = vshrl.u32 %v2434, 16
        %v2451 = vshrl.u32 %v2435, 16
        %v2452 = vshrl.u32 %v2436, 16
        %v2453 = vshrl.u32 %v2437, 16
        %v2454 = vshrl.u32 %v2438, 16
        %v2455 = vshrl.u32 %v2439, 16
        %v2456 = vshrl.u32 %v2440, 16
        %v2457 = vxor.u32 %v2425, %v2441
        %v2458 = vxor.u32 %v2426, %v2442
        %v2459 = vxor.u32 %v2427, %v2443
        %v2460 = vxor.u32 %v2428, %v2444
        %v2461 = vxor.u32 %v2429, %v2445
        %v2462 = vxor.u32 %v2430, %v2446
        %v2463 = vxor.u32 %v2431, %v2447
        %v2464 = vxor.u32 %v2432, %v2448
        %v2465 = vxor.u32 %v2433, %v2449
        %v2466 = vxor.u32 %v2434, %v2450
        %v2467 = vxor.u32 %v2435, %v2451
        %v2468 = vxor.u32 %v2436, %v2452
        %v2469 = vxor.u32 %v2437, %v2453
        %v2470 = vxor.u32 %v2438, %v2454
        %v2471 = vxor.u32 %v2439, %v2455
        %v2472 = vxor.u32 %v2440, %v2456
        %v2473 = vmul.u32 %v2457, 2146121005
        %v2474 = vmul.u32 %v2458, 2146121005
        %v2475 = vmul.u32 %v2459, 2146121005
        %v2476 = vmul.u32 %v2460, 2146121005
        %v2477 = vmul.u32 %v2461, 2146121005
        %v2478 = vmul.u32 %v2462, 2146121005
        %v2479 = vmul.u32 %v2463, 2146121005
        %v2480 = vmul.u32 %v2464, 2146121005
        %v2481 = vmul.u32 %v2465, 2146121005
        %v2482 = vmul.u32 %v2466, 2146121005
        %v2483 = vmul.u32 %v2467, 2146121005
        %v2484 = vmul.u32 %v2468, 2146121005
        %v2485 = vmul.u32 %v2469, 2146121005
        %v2486 = vmul.u32 %v2470, 2146121005
        %v2487 = vmul.u32 %v2471, 2146121005
        %v2488 = vmul.u32 %v2472, 2146121005
        %v2489 = vshrl.u32 %v2473, 15
        %v2490 = vshrl.u32 %v2474, 15
        %v2491 = vshrl.u32 %v2475, 15
        %v2492 = vshrl.u32 %v2476, 15
        %v2493 = vshrl.u32 %v2477, 15
        %v2494 = vshrl.u32 %v2478, 15
        %v2495 = vshrl.u32 %v2479, 15
        %v2496 = vshrl.u32 %v2480, 15
        %v2497 = vshrl.u32 %v2481, 15
        %v2498 = vshrl.u32 %v2482, 15
        %v2499 = vshrl.u32 %v2483, 15
        %v2500 = vshrl.u32 %v2484, 15
        %v2501 = vshrl.u32 %v2485, 15
        %v2502 = vshrl.u32 %v2486, 15
        %v2503 = vshrl.u32 %v2487, 15
        %v2504 = vshrl.u32 %v2488, 15
        %v2505 = vxor.u32 %v2473, %v2489
        %v2506 = vxor.u32 %v2474, %v2490
        %v2507 = vxor.u32 %v2475, %v2491
        %v2508 = vxor.u32 %v2476, %v2492
        %v2509 = vxor.u32 %v2477, %v2493
        %v2510 = vxor.u32 %v2478, %v2494
        %v2511 = vxor.u32 %v2479, %v2495
        %v2512 = vxor.u32 %v2480, %v2496
        %v2513 = vxor.u32 %v2481, %v2497
        %v2514 = vxor.u32 %v2482, %v2498
        %v2515 = vxor.u32 %v2483, %v2499
        %v2516 = vxor.u32 %v2484, %v2500
        %v2517 = vxor.u32 %v2485, %v2501
        %v2518 = vxor.u32 %v2486, %v2502
        %v2519 = vxor.u32 %v2487, %v2503
        %v2520 = vxor.u32 %v2488, %v2504
        %v2521 = vmul.u32 %v2505, 2221713035
        %v2522 = vmul.u32 %v2506, 2221713035
        %v2523 = vmul.u32 %v2507, 2221713035
        %v2524 = vmul.u32 %v2508, 2221713035
        %v2525 = vmul.u32 %v2509, 2221713035
        %v2526 = vmul.u32 %v2510, 2221713035
        %v2527 = vmul.u32 %v2511, 2221713035
        %v2528 = vmul.u32 %v2512, 2221713035
        %v2529 = vmul.u32 %v2513, 2221713035
        %v2530 = vmul.u32 %v2514, 2221713035
        %v2531 = vmul.u32 %v2515, 2221713035
        %v2532 = vmul.u32 %v2516, 2221713035
        %v2533 = vmul.u32 %v2517, 2221713035
        %v2534 = vmul.u32 %v2518, 2221713035
        %v2535 = vmul.u32 %v2519, 2221713035
        %v2536 = vmul.u32 %v2520, 2221713035
        %vm2537 = vcmp.ge.s32.totalorder %v2521, 0
        %vm2538 = vcmp.ge.s32.totalorder %v2522, 0
        %vm2539 = vcmp.ge.s32.totalorder %v2523, 0
        %vm2540 = vcmp.ge.s32.totalorder %v2524, 0
        %vm2541 = vcmp.ge.s32.totalorder %v2525, 0
        %vm2542 = vcmp.ge.s32.totalorder %v2526, 0
        %vm2543 = vcmp.ge.s32.totalorder %v2527, 0
        %vm2544 = vcmp.ge.s32.totalorder %v2528, 0
        %vm2545 = vcmp.ge.s32.totalorder %v2529, 0
        %vm2546 = vcmp.ge.s32.totalorder %v2530, 0
        %vm2547 = vcmp.ge.s32.totalorder %v2531, 0
        %vm2548 = vcmp.ge.s32.totalorder %v2532, 0
        %vm2549 = vcmp.ge.s32.totalorder %v2533, 0
        %vm2550 = vcmp.ge.s32.totalorder %v2534, 0
        %vm2551 = vcmp.ge.s32.totalorder %v2535, 0
        %vm2552 = vcmp.ge.s32.totalorder %v2536, 0
        %vm2553 = vcmp.gt.f32.partialorder %v2362, 0.0
        %vm2554 = vcmp.gt.f32.partialorder %v2365, 0.0
        %vm2555 = vcmp.gt.f32.partialorder %v2370, 0.0
        %vm2556 = vcmp.gt.f32.partialorder %v2373, 0.0
        %vm2557 = vcmp.gt.f32.partialorder %v2378, 0.0
        %vm2558 = vcmp.gt.f32.partialorder %v2381, 0.0
        %vm2559 = vcmp.gt.f32.partialorder %v2386, 0.0
        %vm2560 = vcmp.gt.f32.partialorder %v2389, 0.0
        %vm2561 = vcmp.gt.f32.partialorder %v2394, 0.0
        %vm2562 = vcmp.gt.f32.partialorder %v2397, 0.0
        %vm2563 = vcmp.gt.f32.partialorder %v2402, 0.0
        %vm2564 = vcmp.gt.f32.partialorder %v2405, 0.0
        %vm2565 = vcmp.gt.f32.partialorder %v2410, 0.0
        %vm2566 = vcmp.gt.f32.partialorder %v2413, 0.0
        %vm2567 = vcmp.gt.f32.partialorder %v2418, 0.0
        %vm2568 = vcmp.gt.f32.partialorder %v2421, 0.0
        %vm2569 = vmand %vm2553, %vm2537
        %vm2570 = vmand %vm2554, %vm2538
        %vm2571 = vmand %vm2555, %vm2539
        %vm2572 = vmand %vm2556, %vm2540
        %vm2573 = vmand %vm2557, %vm2541
        %vm2574 = vmand %vm2558, %vm2542
        %vm2575 = vmand %vm2559, %vm2543
        %vm2576 = vmand %vm2560, %vm2544
        %vm2577 = vmand %vm2561, %vm2545
        %vm2578 = vmand %vm2562, %vm2546
        %vm2579 = vmand %vm2563, %vm2547
        %vm2580 = vmand %vm2564, %vm2548
        %vm2581 = vmand %vm2565, %vm2549
        %vm2582 = vmand %vm2566, %vm2550
        %vm2583 = vmand %vm2567, %vm2551
        %vm2584 = vmand %vm2568, %vm2552
        %v2585 = vsel %vm2569, %v2362, 0.0
        %v2586 = vsel %vm2570, %v2365, 0.0
        %v2587 = vsel %vm2571, %v2370, 0.0
        %v2588 = vsel %vm2572, %v2373, 0.0
        %v2589 = vsel %vm2573, %v2378, 0.0
        %v2590 = vsel %vm2574, %v2381, 0.0
        %v2591 = vsel %vm2575, %v2386, 0.0
        %v2592 = vsel %vm2576, %v2389, 0.0
        %v2593 = vsel %vm2577, %v2394, 0.0
        %v2594 = vsel %vm2578, %v2397, 0.0
        %v2595 = vsel %vm2579, %v2402, 0.0
        %v2596 = vsel %vm2580, %v2405, 0.0
        %v2597 = vsel %vm2581, %v2410, 0.0
        %v2598 = vsel %vm2582, %v2413, 0.0
        %v2599 = vsel %vm2583, %v2418, 0.0
        %v2600 = vsel %vm2584, %v2421, 0.0
        %v2601 = vpack.c.bf16 %v2586, %v2585
        %v2602 = vpack.c.bf16 %v2588, %v2587
        %v2603 = vpack.c.bf16 %v2590, %v2589
        %v2604 = vpack.c.bf16 %v2592, %v2591
        %v2605 = vpack.c.bf16 %v2594, %v2593
        %v2606 = vpack.c.bf16 %v2596, %v2595
        %v2607 = vpack.c.bf16 %v2598, %v2597
        %v2608 = vpack.c.bf16 %v2600, %v2599
        %v2609 = vld [vmem:[%s6] sm:$0xf]
        %v2610 = vld [vmem:[%s6 + $0x4] sm:$0xf]
        %v2611 = vld [vmem:[%s6 + $0x8] sm:$0xf]
        %v2612 = vld [vmem:[%s6 + $0xc] sm:$0xf]
        %v2613 = vld [vmem:[%s6 + $0x10] sm:$0xf]
        %v2614 = vld [vmem:[%s6 + $0x14] sm:$0xf]
        %v2615 = vld [vmem:[%s6 + $0x18] sm:$0xf]
        %v2616 = vld [vmem:[%s6 + $0x1c] sm:$0xf]
        %v2617 = vld [vmem:[%s6 + $0x20] sm:$0xf]
        %v2618 = vld [vmem:[%s6 + $0x24] sm:$0xf]
        %v2619 = vld [vmem:[%s6 + $0x28] sm:$0xf]
        %v2620 = vld [vmem:[%s6 + $0x2c] sm:$0xf]
        %v2621 = vld [vmem:[%s6 + $0x30] sm:$0xf]
        %v2622 = vld [vmem:[%s6 + $0x34] sm:$0xf]
        %v2623 = vld [vmem:[%s6 + $0x38] sm:$0xf]
        %v2624 = vld [vmem:[%s6 + $0x3c] sm:$0xf]
        %v2625 = vld [vmem:[%s7] sm:$0x1]
        %v2627 = vlaneseq
        %v2628 = vshrl.u32 %v2627, 7
        %v2629 = vsub.s32 0, %v2628
        %v2630 = vrot.slane %v2625, %v2629
        %v2648 = vunpack.c.l.b16 %v2609
        %v2649 = vunpack.c.l.b16 %v2610
        %v2650 = vunpack.c.l.b16 %v2611
        %v2651 = vunpack.c.l.b16 %v2612
        %v2652 = vunpack.c.l.b16 %v2613
        %v2653 = vunpack.c.l.b16 %v2614
        %v2654 = vunpack.c.l.b16 %v2615
        %v2655 = vunpack.c.l.b16 %v2616
        %v2656 = vunpack.c.l.b16 %v2617
        %v2657 = vunpack.c.l.b16 %v2618
        %v2658 = vunpack.c.l.b16 %v2619
        %v2659 = vunpack.c.l.b16 %v2620
        %v2660 = vunpack.c.l.b16 %v2621
        %v2661 = vunpack.c.l.b16 %v2622
        %v2662 = vunpack.c.l.b16 %v2623
        %v2663 = vunpack.c.l.b16 %v2624
        %v2664 = vpack.c.b16 %v2649, %v2648
        %v2665 = vpack.c.b16 %v2651, %v2650
        %v2666 = vpack.c.b16 %v2653, %v2652
        %v2667 = vpack.c.b16 %v2655, %v2654
        %v2668 = vpack.c.b16 %v2657, %v2656
        %v2669 = vpack.c.b16 %v2659, %v2658
        %v2670 = vpack.c.b16 %v2661, %v2660
        %v2671 = vpack.c.b16 %v2663, %v2662
        %2680 = vmatprep.subr.bf16.mxu0 0
        %2681 = vmatpush1.bf16.msra.mxu0 %v2671
        %2682 = vmatprep.subr.bf16.mxu0 0
        %2683 = vmatpush1.bf16.msra.mxu0 %v2670
        %2684 = vmatprep.subr.bf16.mxu0 0
        %2685 = vmatpush1.bf16.msra.mxu0 %v2669
        %2686 = vmatprep.subr.bf16.mxu0 0
        %2687 = vmatpush1.bf16.msra.mxu0 %v2668
        %2688 = vmatprep.subr.bf16.mxu0 0
        %2689 = vmatpush1.bf16.msra.mxu0 %v2667
        %2690 = vmatprep.subr.bf16.mxu0 0
        %2691 = vmatpush1.bf16.msra.mxu0 %v2666
        %2692 = vmatprep.subr.bf16.mxu0 0
        %2693 = vmatpush1.bf16.msra.mxu0 %v2665
        %2694 = vmatprep.subr.bf16.mxu0 0
        %2695 = vmatpush1.bf16.msra.mxu0 %v2664
        %2696 = vmatprep.subr.bf16.mxu0 0
        %2697 = vmatpush2.bf16.msra.mxu0 0
        %2698 = vmatprep.subr.bf16.mxu0 0
        %2699 = vmatpush2.bf16.msra.mxu0 0
        %2700 = vmatprep.subr.bf16.mxu0 0
        %2701 = vmatpush2.bf16.msra.mxu0 0
        %2702 = vmatprep.subr.bf16.mxu0 0
        %2703 = vmatpush2.bf16.msra.mxu0 0
        %2704 = vmatprep.subr.bf16.mxu0 0
        %2705 = vmatpush2.bf16.msra.mxu0 0
        %2706 = vmatprep.subr.bf16.mxu0 0
        %2707 = vmatpush2.bf16.msra.mxu0 0
        %2708 = vmatprep.subr.bf16.mxu0 0
        %2709 = vmatpush2.bf16.msra.mxu0 0
        %2710 = vmatprep.subr.bf16.mxu0 0
        %2711 = vmatpush2.bf16.msra.mxu0 0
        %2712 = vmatprep.mubr.bf16.mxu0 0
        %2713 = vmatmul.mubr.bf16.gmra.mxu0 %v2601
        %v2714 = vpop.f32.mrf.mxu0
        %v2715 = vadd.f32 %v2630, %v2714
        %v2716 = vpop.f32.mrf.mxu0
        %v2717 = vpop.f32.mrf.mxu0
        %v2718 = vadd.f32 %v2630, %v2717
        %v2719 = vpop.f32.mrf.mxu0
        %2720 = vmatprep.mubr.bf16.mxu0 0
        %2721 = vmatmul.mubr.bf16.gmra.mxu0 %v2602
        %v2722 = vpop.f32.mrf.mxu0
        %v2723 = vadd.f32 %v2630, %v2722
        %v2724 = vpop.f32.mrf.mxu0
        %v2725 = vpop.f32.mrf.mxu0
        %v2726 = vadd.f32 %v2630, %v2725
        %v2727 = vpop.f32.mrf.mxu0
        %2728 = vmatprep.mubr.bf16.mxu0 0
        %2729 = vmatmul.mubr.bf16.gmra.mxu0 %v2603
        %v2730 = vpop.f32.mrf.mxu0
        %v2731 = vadd.f32 %v2630, %v2730
        %v2732 = vpop.f32.mrf.mxu0
        %v2733 = vpop.f32.mrf.mxu0
        %v2734 = vadd.f32 %v2630, %v2733
        %v2735 = vpop.f32.mrf.mxu0
        %2736 = vmatprep.mubr.bf16.mxu0 0
        %2737 = vmatmul.mubr.bf16.gmra.mxu0 %v2604
        %v2738 = vpop.f32.mrf.mxu0
        %v2739 = vadd.f32 %v2630, %v2738
        %v2740 = vpop.f32.mrf.mxu0
        %v2741 = vpop.f32.mrf.mxu0
        %v2742 = vadd.f32 %v2630, %v2741
        %v2743 = vpop.f32.mrf.mxu0
        %2744 = vmatprep.mubr.bf16.mxu0 0
        %2745 = vmatmul.mubr.bf16.gmra.mxu0 %v2605
        %v2746 = vpop.f32.mrf.mxu0
        %v2747 = vadd.f32 %v2630, %v2746
        %v2748 = vpop.f32.mrf.mxu0
        %v2749 = vpop.f32.mrf.mxu0
        %v2750 = vadd.f32 %v2630, %v2749
        %v2751 = vpop.f32.mrf.mxu0
        %2752 = vmatprep.mubr.bf16.mxu0 0
        %2753 = vmatmul.mubr.bf16.gmra.mxu0 %v2606
        %v2754 = vpop.f32.mrf.mxu0
        %v2755 = vadd.f32 %v2630, %v2754
        %v2756 = vpop.f32.mrf.mxu0
        %v2757 = vpop.f32.mrf.mxu0
        %v2758 = vadd.f32 %v2630, %v2757
        %v2759 = vpop.f32.mrf.mxu0
        %2760 = vmatprep.mubr.bf16.mxu0 0
        %2761 = vmatmul.mubr.bf16.gmra.mxu0 %v2607
        %v2762 = vpop.f32.mrf.mxu0
        %v2763 = vadd.f32 %v2630, %v2762
        %v2764 = vpop.f32.mrf.mxu0
        %v2765 = vpop.f32.mrf.mxu0
        %v2766 = vadd.f32 %v2630, %v2765
        %v2767 = vpop.f32.mrf.mxu0
        %2768 = vmatprep.mubr.bf16.mxu0 0
        %2769 = vmatmul.mubr.bf16.gmra.mxu0 %v2608
        %v2770 = vpop.f32.mrf.mxu0
        %v2771 = vadd.f32 %v2630, %v2770
        %v2772 = vpop.f32.mrf.mxu0
        %v2773 = vpop.f32.mrf.mxu0
        %v2774 = vadd.f32 %v2630, %v2773
        %v2775 = vpop.f32.mrf.mxu0
        %2776 = vdwg.mxu0
        %v2777 = vadd.s32 %v1820, 2004795789
        %v2778 = vadd.s32 %v376, %v2777
        %v2779 = vadd.s32 %v377, %v2777
        %v2780 = vadd.s32 %v378, %v2777
        %v2781 = vadd.s32 %v379, %v2777
        %v2782 = vadd.s32 %v380, %v2777
        %v2783 = vadd.s32 %v381, %v2777
        %v2784 = vadd.s32 %v382, %v2777
        %v2785 = vadd.s32 %v383, %v2777
        %v2786 = vadd.s32 %v384, %v2777
        %v2787 = vadd.s32 %v385, %v2777
        %v2788 = vadd.s32 %v386, %v2777
        %v2789 = vadd.s32 %v387, %v2777
        %v2790 = vadd.s32 %v388, %v2777
        %v2791 = vadd.s32 %v389, %v2777
        %v2792 = vadd.s32 %v390, %v2777
        %v2793 = vadd.s32 %v391, %v2777
        %v2794 = vshrl.u32 %v2778, 16
        %v2795 = vshrl.u32 %v2779, 16
        %v2796 = vshrl.u32 %v2780, 16
        %v2797 = vshrl.u32 %v2781, 16
        %v2798 = vshrl.u32 %v2782, 16
        %v2799 = vshrl.u32 %v2783, 16
        %v2800 = vshrl.u32 %v2784, 16
        %v2801 = vshrl.u32 %v2785, 16
        %v2802 = vshrl.u32 %v2786, 16
        %v2803 = vshrl.u32 %v2787, 16
        %v2804 = vshrl.u32 %v2788, 16
        %v2805 = vshrl.u32 %v2789, 16
        %v2806 = vshrl.u32 %v2790, 16
        %v2807 = vshrl.u32 %v2791, 16
        %v2808 = vshrl.u32 %v2792, 16
        %v2809 = vshrl.u32 %v2793, 16
        %v2810 = vxor.u32 %v2778, %v2794
        %v2811 = vxor.u32 %v2779, %v2795
        %v2812 = vxor.u32 %v2780, %v2796
        %v2813 = vxor.u32 %v2781, %v2797
        %v2814 = vxor.u32 %v2782, %v2798
        %v2815 = vxor.u32 %v2783, %v2799
        %v2816 = vxor.u32 %v2784, %v2800
        %v2817 = vxor.u32 %v2785, %v2801
        %v2818 = vxor.u32 %v2786, %v2802
        %v2819 = vxor.u32 %v2787, %v2803
        %v2820 = vxor.u32 %v2788, %v2804
        %v2821 = vxor.u32 %v2789, %v2805
        %v2822 = vxor.u32 %v2790, %v2806
        %v2823 = vxor.u32 %v2791, %v2807
        %v2824 = vxor.u32 %v2792, %v2808
        %v2825 = vxor.u32 %v2793, %v2809
        %v2826 = vmul.u32 %v2810, 2146121005
        %v2827 = vmul.u32 %v2811, 2146121005
        %v2828 = vmul.u32 %v2812, 2146121005
        %v2829 = vmul.u32 %v2813, 2146121005
        %v2830 = vmul.u32 %v2814, 2146121005
        %v2831 = vmul.u32 %v2815, 2146121005
        %v2832 = vmul.u32 %v2816, 2146121005
        %v2833 = vmul.u32 %v2817, 2146121005
        %v2834 = vmul.u32 %v2818, 2146121005
        %v2835 = vmul.u32 %v2819, 2146121005
        %v2836 = vmul.u32 %v2820, 2146121005
        %v2837 = vmul.u32 %v2821, 2146121005
        %v2838 = vmul.u32 %v2822, 2146121005
        %v2839 = vmul.u32 %v2823, 2146121005
        %v2840 = vmul.u32 %v2824, 2146121005
        %v2841 = vmul.u32 %v2825, 2146121005
        %v2842 = vshrl.u32 %v2826, 15
        %v2843 = vshrl.u32 %v2827, 15
        %v2844 = vshrl.u32 %v2828, 15
        %v2845 = vshrl.u32 %v2829, 15
        %v2846 = vshrl.u32 %v2830, 15
        %v2847 = vshrl.u32 %v2831, 15
        %v2848 = vshrl.u32 %v2832, 15
        %v2849 = vshrl.u32 %v2833, 15
        %v2850 = vshrl.u32 %v2834, 15
        %v2851 = vshrl.u32 %v2835, 15
        %v2852 = vshrl.u32 %v2836, 15
        %v2853 = vshrl.u32 %v2837, 15
        %v2854 = vshrl.u32 %v2838, 15
        %v2855 = vshrl.u32 %v2839, 15
        %v2856 = vshrl.u32 %v2840, 15
        %v2857 = vshrl.u32 %v2841, 15
        %v2858 = vxor.u32 %v2826, %v2842
        %v2859 = vxor.u32 %v2827, %v2843
        %v2860 = vxor.u32 %v2828, %v2844
        %v2861 = vxor.u32 %v2829, %v2845
        %v2862 = vxor.u32 %v2830, %v2846
        %v2863 = vxor.u32 %v2831, %v2847
        %v2864 = vxor.u32 %v2832, %v2848
        %v2865 = vxor.u32 %v2833, %v2849
        %v2866 = vxor.u32 %v2834, %v2850
        %v2867 = vxor.u32 %v2835, %v2851
        %v2868 = vxor.u32 %v2836, %v2852
        %v2869 = vxor.u32 %v2837, %v2853
        %v2870 = vxor.u32 %v2838, %v2854
        %v2871 = vxor.u32 %v2839, %v2855
        %v2872 = vxor.u32 %v2840, %v2856
        %v2873 = vxor.u32 %v2841, %v2857
        %v2874 = vmul.u32 %v2858, 2221713035
        %v2875 = vmul.u32 %v2859, 2221713035
        %v2876 = vmul.u32 %v2860, 2221713035
        %v2877 = vmul.u32 %v2861, 2221713035
        %v2878 = vmul.u32 %v2862, 2221713035
        %v2879 = vmul.u32 %v2863, 2221713035
        %v2880 = vmul.u32 %v2864, 2221713035
        %v2881 = vmul.u32 %v2865, 2221713035
        %v2882 = vmul.u32 %v2866, 2221713035
        %v2883 = vmul.u32 %v2867, 2221713035
        %v2884 = vmul.u32 %v2868, 2221713035
        %v2885 = vmul.u32 %v2869, 2221713035
        %v2886 = vmul.u32 %v2870, 2221713035
        %v2887 = vmul.u32 %v2871, 2221713035
        %v2888 = vmul.u32 %v2872, 2221713035
        %v2889 = vmul.u32 %v2873, 2221713035
        %vm2890 = vcmp.ge.s32.totalorder %v2874, 0
        %vm2891 = vcmp.ge.s32.totalorder %v2875, 0
        %vm2892 = vcmp.ge.s32.totalorder %v2876, 0
        %vm2893 = vcmp.ge.s32.totalorder %v2877, 0
        %vm2894 = vcmp.ge.s32.totalorder %v2878, 0
        %vm2895 = vcmp.ge.s32.totalorder %v2879, 0
        %vm2896 = vcmp.ge.s32.totalorder %v2880, 0
        %vm2897 = vcmp.ge.s32.totalorder %v2881, 0
        %vm2898 = vcmp.ge.s32.totalorder %v2882, 0
        %vm2899 = vcmp.ge.s32.totalorder %v2883, 0
        %vm2900 = vcmp.ge.s32.totalorder %v2884, 0
        %vm2901 = vcmp.ge.s32.totalorder %v2885, 0
        %vm2902 = vcmp.ge.s32.totalorder %v2886, 0
        %vm2903 = vcmp.ge.s32.totalorder %v2887, 0
        %vm2904 = vcmp.ge.s32.totalorder %v2888, 0
        %vm2905 = vcmp.ge.s32.totalorder %v2889, 0
        %vm2906 = vcmp.gt.f32.partialorder %v2715, 0.0
        %vm2907 = vcmp.gt.f32.partialorder %v2718, 0.0
        %vm2908 = vcmp.gt.f32.partialorder %v2723, 0.0
        %vm2909 = vcmp.gt.f32.partialorder %v2726, 0.0
        %vm2910 = vcmp.gt.f32.partialorder %v2731, 0.0
        %vm2911 = vcmp.gt.f32.partialorder %v2734, 0.0
        %vm2912 = vcmp.gt.f32.partialorder %v2739, 0.0
        %vm2913 = vcmp.gt.f32.partialorder %v2742, 0.0
        %vm2914 = vcmp.gt.f32.partialorder %v2747, 0.0
        %vm2915 = vcmp.gt.f32.partialorder %v2750, 0.0
        %vm2916 = vcmp.gt.f32.partialorder %v2755, 0.0
        %vm2917 = vcmp.gt.f32.partialorder %v2758, 0.0
        %vm2918 = vcmp.gt.f32.partialorder %v2763, 0.0
        %vm2919 = vcmp.gt.f32.partialorder %v2766, 0.0
        %vm2920 = vcmp.gt.f32.partialorder %v2771, 0.0
        %vm2921 = vcmp.gt.f32.partialorder %v2774, 0.0
        %vm2922 = vmand %vm2906, %vm2890
        %vm2923 = vmand %vm2907, %vm2891
        %vm2924 = vmand %vm2908, %vm2892
        %vm2925 = vmand %vm2909, %vm2893
        %vm2926 = vmand %vm2910, %vm2894
        %vm2927 = vmand %vm2911, %vm2895
        %vm2928 = vmand %vm2912, %vm2896
        %vm2929 = vmand %vm2913, %vm2897
        %vm2930 = vmand %vm2914, %vm2898
        %vm2931 = vmand %vm2915, %vm2899
        %vm2932 = vmand %vm2916, %vm2900
        %vm2933 = vmand %vm2917, %vm2901
        %vm2934 = vmand %vm2918, %vm2902
        %vm2935 = vmand %vm2919, %vm2903
        %vm2936 = vmand %vm2920, %vm2904
        %vm2937 = vmand %vm2921, %vm2905
        %v2938 = vsel %vm2922, %v2715, 0.0
        %v2939 = vsel %vm2923, %v2718, 0.0
        %v2940 = vsel %vm2924, %v2723, 0.0
        %v2941 = vsel %vm2925, %v2726, 0.0
        %v2942 = vsel %vm2926, %v2731, 0.0
        %v2943 = vsel %vm2927, %v2734, 0.0
        %v2944 = vsel %vm2928, %v2739, 0.0
        %v2945 = vsel %vm2929, %v2742, 0.0
        %v2946 = vsel %vm2930, %v2747, 0.0
        %v2947 = vsel %vm2931, %v2750, 0.0
        %v2948 = vsel %vm2932, %v2755, 0.0
        %v2949 = vsel %vm2933, %v2758, 0.0
        %v2950 = vsel %vm2934, %v2763, 0.0
        %v2951 = vsel %vm2935, %v2766, 0.0
        %v2952 = vsel %vm2936, %v2771, 0.0
        %v2953 = vsel %vm2937, %v2774, 0.0
        %v2954 = vpack.c.bf16 %v2939, %v2938
        %v2955 = vpack.c.bf16 %v2941, %v2940
        %v2956 = vpack.c.bf16 %v2943, %v2942
        %v2957 = vpack.c.bf16 %v2945, %v2944
        %v2958 = vpack.c.bf16 %v2947, %v2946
        %v2959 = vpack.c.bf16 %v2949, %v2948
        %v2960 = vpack.c.bf16 %v2951, %v2950
        %v2961 = vpack.c.bf16 %v2953, %v2952
        %v2962 = vld [vmem:[%s8] sm:$0xf]
        %v2963 = vld [vmem:[%s8 + $0x4] sm:$0xf]
        %v2964 = vld [vmem:[%s8 + $0x8] sm:$0xf]
        %v2965 = vld [vmem:[%s8 + $0xc] sm:$0xf]
        %v2966 = vld [vmem:[%s8 + $0x10] sm:$0xf]
        %v2967 = vld [vmem:[%s8 + $0x14] sm:$0xf]
        %v2968 = vld [vmem:[%s8 + $0x18] sm:$0xf]
        %v2969 = vld [vmem:[%s8 + $0x1c] sm:$0xf]
        %v2970 = vld [vmem:[%s8 + $0x20] sm:$0xf]
        %v2971 = vld [vmem:[%s8 + $0x24] sm:$0xf]
        %v2972 = vld [vmem:[%s8 + $0x28] sm:$0xf]
        %v2973 = vld [vmem:[%s8 + $0x2c] sm:$0xf]
        %v2974 = vld [vmem:[%s8 + $0x30] sm:$0xf]
        %v2975 = vld [vmem:[%s8 + $0x34] sm:$0xf]
        %v2976 = vld [vmem:[%s8 + $0x38] sm:$0xf]
        %v2977 = vld [vmem:[%s8 + $0x3c] sm:$0xf]
        %v2978 = vld [vmem:[%s9] sm:$0x1]
        %v2980 = vlaneseq
        %v2981 = vshrl.u32 %v2980, 7
        %v2982 = vsub.s32 0, %v2981
        %v2983 = vrot.slane %v2978, %v2982
        %v3001 = vunpack.c.l.b16 %v2962
        %v3002 = vunpack.c.l.b16 %v2963
        %v3003 = vunpack.c.l.b16 %v2964
        %v3004 = vunpack.c.l.b16 %v2965
        %v3005 = vunpack.c.l.b16 %v2966
        %v3006 = vunpack.c.l.b16 %v2967
        %v3007 = vunpack.c.l.b16 %v2968
        %v3008 = vunpack.c.l.b16 %v2969
        %v3009 = vunpack.c.l.b16 %v2970
        %v3010 = vunpack.c.l.b16 %v2971
        %v3011 = vunpack.c.l.b16 %v2972
        %v3012 = vunpack.c.l.b16 %v2973
        %v3013 = vunpack.c.l.b16 %v2974
        %v3014 = vunpack.c.l.b16 %v2975
        %v3015 = vunpack.c.l.b16 %v2976
        %v3016 = vunpack.c.l.b16 %v2977
        %v3017 = vpack.c.b16 %v3002, %v3001
        %v3018 = vpack.c.b16 %v3004, %v3003
        %v3019 = vpack.c.b16 %v3006, %v3005
        %v3020 = vpack.c.b16 %v3008, %v3007
        %v3021 = vpack.c.b16 %v3010, %v3009
        %v3022 = vpack.c.b16 %v3012, %v3011
        %v3023 = vpack.c.b16 %v3014, %v3013
        %v3024 = vpack.c.b16 %v3016, %v3015
        %3033 = vmatprep.subr.bf16.mxu0 0
        %3034 = vmatpush1.bf16.msra.mxu0 %v3024
        %3035 = vmatprep.subr.bf16.mxu0 0
        %3036 = vmatpush1.bf16.msra.mxu0 %v3023
        %3037 = vmatprep.subr.bf16.mxu0 0
        %3038 = vmatpush1.bf16.msra.mxu0 %v3022
        %3039 = vmatprep.subr.bf16.mxu0 0
        %3040 = vmatpush1.bf16.msra.mxu0 %v3021
        %3041 = vmatprep.subr.bf16.mxu0 0
        %3042 = vmatpush1.bf16.msra.mxu0 %v3020
        %3043 = vmatprep.subr.bf16.mxu0 0
        %3044 = vmatpush1.bf16.msra.mxu0 %v3019
        %3045 = vmatprep.subr.bf16.mxu0 0
        %3046 = vmatpush1.bf16.msra.mxu0 %v3018
        %3047 = vmatprep.subr.bf16.mxu0 0
        %3048 = vmatpush1.bf16.msra.mxu0 %v3017
        %3049 = vmatprep.subr.bf16.mxu0 0
        %3050 = vmatpush2.bf16.msra.mxu0 0
        %3051 = vmatprep.subr.bf16.mxu0 0
        %3052 = vmatpush2.bf16.msra.mxu0 0
        %3053 = vmatprep.subr.bf16.mxu0 0
        %3054 = vmatpush2.bf16.msra.mxu0 0
        %3055 = vmatprep.subr.bf16.mxu0 0
        %3056 = vmatpush2.bf16.msra.mxu0 0
        %3057 = vmatprep.subr.bf16.mxu0 0
        %3058 = vmatpush2.bf16.msra.mxu0 0
        %3059 = vmatprep.subr.bf16.mxu0 0
        %3060 = vmatpush2.bf16.msra.mxu0 0
        %3061 = vmatprep.subr.bf16.mxu0 0
        %3062 = vmatpush2.bf16.msra.mxu0 0
        %3063 = vmatprep.subr.bf16.mxu0 0
        %3064 = vmatpush2.bf16.msra.mxu0 0
        %3065 = vmatprep.mubr.bf16.mxu0 0
        %3066 = vmatmul.mubr.bf16.gmra.mxu0 %v2954
        %v3067 = vpop.f32.mrf.mxu0
        %v3068 = vadd.f32 %v2983, %v3067
        %v3069 = vpop.f32.mrf.mxu0
        %v3070 = vpop.f32.mrf.mxu0
        %v3071 = vadd.f32 %v2983, %v3070
        %v3072 = vpop.f32.mrf.mxu0
        %3073 = vmatprep.mubr.bf16.mxu0 0
        %3074 = vmatmul.mubr.bf16.gmra.mxu0 %v2955
        %v3075 = vpop.f32.mrf.mxu0
        %v3076 = vadd.f32 %v2983, %v3075
        %v3077 = vpop.f32.mrf.mxu0
        %v3078 = vpop.f32.mrf.mxu0
        %v3079 = vadd.f32 %v2983, %v3078
        %v3080 = vpop.f32.mrf.mxu0
        %3081 = vmatprep.mubr.bf16.mxu0 0
        %3082 = vmatmul.mubr.bf16.gmra.mxu0 %v2956
        %v3083 = vpop.f32.mrf.mxu0
        %v3084 = vadd.f32 %v2983, %v3083
        %v3085 = vpop.f32.mrf.mxu0
        %v3086 = vpop.f32.mrf.mxu0
        %v3087 = vadd.f32 %v2983, %v3086
        %v3088 = vpop.f32.mrf.mxu0
        %3089 = vmatprep.mubr.bf16.mxu0 0
        %3090 = vmatmul.mubr.bf16.gmra.mxu0 %v2957
        %v3091 = vpop.f32.mrf.mxu0
        %v3092 = vadd.f32 %v2983, %v3091
        %v3093 = vpop.f32.mrf.mxu0
        %v3094 = vpop.f32.mrf.mxu0
        %v3095 = vadd.f32 %v2983, %v3094
        %v3096 = vpop.f32.mrf.mxu0
        %3097 = vmatprep.mubr.bf16.mxu0 0
        %3098 = vmatmul.mubr.bf16.gmra.mxu0 %v2958
        %v3099 = vpop.f32.mrf.mxu0
        %v3100 = vadd.f32 %v2983, %v3099
        %v3101 = vpop.f32.mrf.mxu0
        %v3102 = vpop.f32.mrf.mxu0
        %v3103 = vadd.f32 %v2983, %v3102
        %v3104 = vpop.f32.mrf.mxu0
        %3105 = vmatprep.mubr.bf16.mxu0 0
        %3106 = vmatmul.mubr.bf16.gmra.mxu0 %v2959
        %v3107 = vpop.f32.mrf.mxu0
        %v3108 = vadd.f32 %v2983, %v3107
        %v3109 = vpop.f32.mrf.mxu0
        %v3110 = vpop.f32.mrf.mxu0
        %v3111 = vadd.f32 %v2983, %v3110
        %v3112 = vpop.f32.mrf.mxu0
        %3113 = vmatprep.mubr.bf16.mxu0 0
        %3114 = vmatmul.mubr.bf16.gmra.mxu0 %v2960
        %v3115 = vpop.f32.mrf.mxu0
        %v3116 = vadd.f32 %v2983, %v3115
        %v3117 = vpop.f32.mrf.mxu0
        %v3118 = vpop.f32.mrf.mxu0
        %v3119 = vadd.f32 %v2983, %v3118
        %v3120 = vpop.f32.mrf.mxu0
        %3121 = vmatprep.mubr.bf16.mxu0 0
        %3122 = vmatmul.mubr.bf16.gmra.mxu0 %v2961
        %v3123 = vpop.f32.mrf.mxu0
        %v3124 = vadd.f32 %v2983, %v3123
        %v3125 = vpop.f32.mrf.mxu0
        %v3126 = vpop.f32.mrf.mxu0
        %v3127 = vadd.f32 %v2983, %v3126
        %v3128 = vpop.f32.mrf.mxu0
        %3129 = vdwg.mxu0
        %3130 = vst [vmem:[%s330] sm:$0xff] %v3068
        %3131 = vst [vmem:[%s330 + $0x8] sm:$0xff] %v3071
        %3132 = vst [vmem:[%s330 + $0x10] sm:$0xff] %v3076
        %3133 = vst [vmem:[%s330 + $0x18] sm:$0xff] %v3079
        %3134 = vst [vmem:[%s330 + $0x20] sm:$0xff] %v3084
        %3135 = vst [vmem:[%s330 + $0x28] sm:$0xff] %v3087
        %3136 = vst [vmem:[%s330 + $0x30] sm:$0xff] %v3092
        %3137 = vst [vmem:[%s330 + $0x38] sm:$0xff] %v3095
        %3138 = vst [vmem:[%s330 + $0x40] sm:$0xff] %v3100
        %3139 = vst [vmem:[%s330 + $0x48] sm:$0xff] %v3103
        %3140 = vst [vmem:[%s330 + $0x50] sm:$0xff] %v3108
        %3141 = vst [vmem:[%s330 + $0x58] sm:$0xff] %v3111
        %3142 = vst [vmem:[%s330 + $0x60] sm:$0xff] %v3116
        %3143 = vst [vmem:[%s330 + $0x68] sm:$0xff] %v3119
        %3144 = vst [vmem:[%s330 + $0x70] sm:$0xff] %v3124
        %3145 = vst [vmem:[%s330 + $0x78] sm:$0xff] %v3127
        %s3146 = sand.u32 %s227, 1
        %s3147 = scalar_lea.sflag [#allocation5], %s3146
        %s3148 = sand.u32 %s227, 1
        %s3149 = smul.addr %s3148, 128
        %s3150 = scalar_lea.vmem [#allocation4], %s3149
        // Predicated region
        $region57: #{tpu_custom_call.1} parent=55 // pred_check
          %p3151 = pneg %p237
        $region58: #{tpu_custom_call.1} parent=55 // pred_check_branch
          %3153 = sbr.rel (%p3151) target = $region60
        $region59: #{tpu_custom_call.1} parent=55 // pred_region
          %s3154 = smul.u32 16, %s25
          %s3156 = ssub.s32 2048, 2048
          %3157 = vsyncadd %s3147, %s3156
          %s3158 = smul.addr %s3154, 128
          %s3159 = scalar_lea.hbm %s10, %s3158
          %s3160 = sshll.u32 %s3150, 4
          %s3161 = int_to_ptr.vmem [resolvable:$true] %s3160
          %3166 = dma.vmem_to_hbm [thread:$0]  %s3161, 2048, %s3159, %s3147, 128, 128, 8
        $region60: #{tpu_custom_call.1} parent=55 // pred_fallthru
          _
      $region56: #{tpu_custom_call.1} parent=5 // pred_fallthru
        _
      %p3167 = scmp.le.s32.totalorder 2, %s20
      // Predicated region
      $region61: #{tpu_custom_call.1} parent=5 // pred_check
        %p3168 = pneg %p3167
      $region62: #{tpu_custom_call.1} parent=5 // pred_check_branch
        %3170 = sbr.rel (%p3168) target = $region64
      $region63: #{tpu_custom_call.1} parent=5 // pred_region
        %s3171 = ssub.s32 %s20, 2
        // Predicated region
        $region65: #{tpu_custom_call.1} parent=63 // pred_check
          %p3172 = pneg %p243
        $region66: #{tpu_custom_call.1} parent=63 // pred_check_branch
          %3174 = sbr.rel (%p3172) target = $region68
        $region67: #{tpu_custom_call.1} parent=63 // pred_region
          %s3175 = sand.u32 %s228, 1
          %s3176 = scalar_lea.sflag [#allocation5], %s3175
          %s3177 = sand.u32 %s228, 1
          %s3178 = smul.addr %s3177, 128
          %s3179 = scalar_lea.vmem [#allocation4], %s3178
          %3180 = dma.done %s3176, 2048
        $region68: #{tpu_custom_call.1} parent=63 // pred_fallthru
          _
      $region64: #{tpu_custom_call.1} parent=5 // pred_fallthru
        _
    $region6: #{tpu_custom_call.1} parent=1 // loop_footer
      %s24 = sadd.s32 1, %s20
    $region7: #{tpu_custom_call.1} parent=1 // loop_footer_branch
      %19 = sbr.rel target = $region3
    $region8: #{tpu_custom_call.1} parent=1 // loop_exit
      _
    %3181 = vsyncpa [#allocation5], 1
    %s3182 = scalar_lea.sflag [#allocation5], 1
    %3183 = vsyncpa %s3182, 1

</llo_original>
